<compile_context>
chip_gen: v7x
topology: tpu7x:2x2x1
jax: 0.10.0
libtpu: 0.0.40
codegen_flags: <defaults>
</compile_context>

<pallas_src>
import jax
import jax.numpy as jnp
from jax.experimental import pallas as pl
from jax.experimental.pallas import tpu as pltpu


# -----------------------------------------------------------------------------
# Pallas kernel for one SingleStageTCN stage (whole stage fused in one kernel).
# -----------------------------------------------------------------------------
def _make_stage_kernel(num_layers, T, T_pad, num_filters):
    F = num_filters

    def kernel(x_ref, wf_ref, bf_ref, wdil_ref, bdil_ref, wone_ref, bone_ref,
               wlast_ref, blast_ref, out_ref):
        # x_ref block: (1, Cin, T_pad) for the current batch element.
        x = x_ref[0].astype(jnp.bfloat16)                        # (Cin, T_pad)

        # first_layer: Conv1d(Cin -> F, k=1)  ==  (F, Cin) @ (Cin, T_pad)
        cur = jnp.dot(wf_ref[...], x,
                      preferred_element_type=jnp.float32) + bf_ref[...]

        # Lane mask selecting the real time steps.  Padded columns must act as
        # zeros for the dilated conv taps (the biases / residuals would
        # otherwise leak into the valid region via the lane rotations).
        valid = jax.lax.broadcasted_iota(jnp.int32, (F, T_pad), 1) < T

        for i in range(num_layers):          # static unroll (num_layers small)
            d = i + 1                        # dilation == padding for layer i
            residual = cur

            cur_m = jnp.where(valid, cur, 0.0)

            # Taps at time offsets -d, 0, +d via lane rotation (XLU).
            # T_pad >= T + num_layers, so the wrapped-around columns are
            # guaranteed to be the zeroed padding columns.
            tap_m = pltpu.roll(cur_m, shift=d, axis=1)           # x[:, t - d]
            tap_p = pltpu.roll(cur_m, shift=T_pad - d, axis=1)   # x[:, t + d]

            # Fuse the 3 taps into one K = 3F matmul.
            xcat = jnp.concatenate([tap_m, cur_m, tap_p],
                                   axis=0).astype(jnp.bfloat16)  # (3F, T_pad)

            # dilated Conv1d(F -> F, k=3, dilation=d, padding=d) + ReLU
            acc = jnp.dot(wdil_ref[i], xcat,
                          preferred_element_type=jnp.float32) + bdil_ref[i]
            acc = jnp.maximum(acc, 0.0)

            # Conv1d(F -> F, k=1)
            cur = jnp.dot(wone_ref[i], acc.astype(jnp.bfloat16),
                          preferred_element_type=jnp.float32) + bone_ref[i]

            # residual connection
            cur = cur + residual

        # last_layer: Conv1d(F -> num_classes, k=1)
        out = jnp.dot(wlast_ref[...], cur.astype(jnp.bfloat16),
                      preferred_element_type=jnp.float32) + blast_ref[...]
        out_ref[0] = out.astype(out_ref.dtype)

    return kernel


def run_stage(x_nct, params):
    """One SingleStageTCN stage.  x_nct: (N, Cin, T) float32 -> (N, C, T)."""
    N, Cin, T = x_nct.shape
    L, F = params["w_dil"].shape[0], params["w_dil"].shape[1]
    C = params["w_last"].shape[0]
    maxd = L                                   # maximum dilation of this stage

    # Pad time so (a) the lane axis is a multiple of 128 and (b) the ±d lane
    # rotations only wrap zeroed padding columns (T_pad >= T + maxd).
    T_pad = ((T + maxd + 127) // 128) * 128
    x = jnp.pad(x_nct, ((0, 0), (0, 0), (0, T_pad - T)))

    # Weight prep (done once in the wrapper, not per grid step):
    #  * bf16 for everything that feeds the MXU, f32 biases as (Cout, 1),
    #  * w_dil (L, F, F, 3) -> (L, F, 3F) with tap-major columns matching the
    #    [tap_-d, tap_0, tap_+d] concatenation order inside the kernel.
    wf = params["w_first"].astype(jnp.bfloat16)                   # (F, Cin)
    bf = params["b_first"].reshape(F, 1)
    wdil = jnp.transpose(params["w_dil"], (0, 1, 3, 2)) \
              .reshape(L, F, 3 * F).astype(jnp.bfloat16)          # (L, F, 3F)
    bdil = params["b_dil"].reshape(L, F, 1)
    wone = params["w_one"].astype(jnp.bfloat16)                   # (L, F, F)
    bone = params["b_one"].reshape(L, F, 1)
    wlast = params["w_last"].astype(jnp.bfloat16)                 # (C, F)
    blast = params["b_last"].reshape(C, 1)

    kernel = _make_stage_kernel(L, T, T_pad, F)

    # TODO(synk): for long sequences (T >~ 2k) add a T-tile grid axis with a
    # maxd-lane halo (and raise vmem_limit_bytes); at the demo sizes the whole
    # padded sequence fits comfortably in VMEM.
    out = pl.pallas_call(
        kernel,
        out_shape=jax.ShapeDtypeStruct((N, C, T_pad), jnp.float32),
        grid_spec=pltpu.PrefetchScalarGridSpec(
            num_scalar_prefetch=0,
            grid=(N,),
            in_specs=[
                pl.BlockSpec((1, Cin, T_pad), lambda b: (b, 0, 0)),    # x
                pl.BlockSpec((F, Cin), lambda b: (0, 0)),              # w_first
                pl.BlockSpec((F, 1), lambda b: (0, 0)),                # b_first
                pl.BlockSpec((L, F, 3 * F), lambda b: (0, 0, 0)),      # w_dil
                pl.BlockSpec((L, F, 1), lambda b: (0, 0, 0)),          # b_dil
                pl.BlockSpec((L, F, F), lambda b: (0, 0, 0)),          # w_one
                pl.BlockSpec((L, F, 1), lambda b: (0, 0, 0)),          # b_one
                pl.BlockSpec((C, F), lambda b: (0, 0)),                # w_last
                pl.BlockSpec((C, 1), lambda b: (0, 0)),                # b_last
            ],
            out_specs=pl.BlockSpec((1, C, T_pad), lambda b: (b, 0, 0)),
        ),
        compiler_params=pltpu.CompilerParams(
            dimension_semantics=("parallel",)),        # batch over both v7x TCs
    )(x, wf, bf, wdil, bdil, wone, bone, wlast, blast)

    return out[:, :, :T]                                          # (N, C, T)


def multi_stage_tcn(x, stages_params):
    out = x
    for p in stages_params:
        out = run_stage(out, p)
    return out


# -----------------------------------------------------------------------------
# Deterministic parameter initialization (PyTorch-style uniform bounds).
# Weights are stored in PyTorch's (Cout, Cin[, K]) layout.
# -----------------------------------------------------------------------------
def _uniform(key, shape, fan_in):
    bound = 1.0 / float(fan_in) ** 0.5
    return jax.random.uniform(key, shape, jnp.float32, -bound, bound)


def init_stage_params(key, num_layers, num_filters, num_classes, in_channels):
    ks = jax.random.split(key, 8)
    F, L, C = num_filters, num_layers, num_classes
    return dict(
        w_first=_uniform(ks[0], (F, in_channels), in_channels),
        b_first=_uniform(ks[1], (F,), in_channels),
        w_dil=_uniform(ks[2], (L, F, F, 3), F * 3),
        b_dil=_uniform(ks[3], (L, F), F * 3),
        w_one=_uniform(ks[4], (L, F, F), F),
        b_one=_uniform(ks[5], (L, F), F),
        w_last=_uniform(ks[6], (C, F), F),
        b_last=_uniform(ks[7], (C,), F),
    )


# -----------------------------------------------------------------------------
# Pure-JAX reference (real dilated convs) for verification.
# -----------------------------------------------------------------------------
def _conv1d_ref(x, w, b, dilation=1, padding=0):
    # x: (N, C, T), w: (Cout, Cin, K), b: (Cout,)
    y = jax.lax.conv_general_dilated(
        x, w, window_strides=(1,), padding=[(padding, padding)],
        rhs_dilation=(dilation,), dimension_numbers=("NCH", "OIH", "NCH"))
    return y + b[None, :, None]


def stage_ref(x, p):
    out = _conv1d_ref(x, p["w_first"][:, :, None], p["b_first"])
    L = p["w_dil"].shape[0]
    for i in range(L):
        d = i + 1
        residual = out
        out = _conv1d_ref(out, p["w_dil"][i], p["b_dil"][i],
                          dilation=d, padding=d)
        out = jnp.maximum(out, 0.0)
        out = _conv1d_ref(out, p["w_one"][i][:, :, None], p["b_one"][i])
        out = out + residual
    out = _conv1d_ref(out, p["w_last"][:, :, None], p["b_last"])
    return out


def multi_stage_ref(x, stages_params):
    out = x
    for p in stages_params:
        out = stage_ref(out, p)
    return out


# -----------------------------------------------------------------------------
if __name__ == "__main__":
    # Small config (kernel_size must be 3 so residual shapes match, as in the
    # original MS-TCN usage).
    num_stages = 2
    num_layers = 3
    num_filters = 32
    kernel_size = 3
    num_classes = 8
    in_channels = 2048        # hardcoded first-stage input size in the module
    N, T = 2, 16

    key = jax.random.PRNGKey(0)
    kx, kp = jax.random.split(key)
    x = jax.random.normal(kx, (N, in_channels, T), jnp.float32)   # PyTorch NCL

    stage_keys = jax.random.split(kp, num_stages)
    stages_params = [
        init_stage_params(stage_keys[s], num_layers, num_filters, num_classes,
                          in_channels if s == 0 else num_classes)
        for s in range(num_stages)
    ]

    out = multi_stage_tcn(x, stages_params)
    out = jax.block_until_ready(out)
    assert out.shape == (N, num_classes, T), out.shape

    ref = jax.block_until_ready(multi_stage_ref(x, stages_params))
    max_diff = float(jnp.max(jnp.abs(out - ref)))
    assert max_diff < 5e-2, f"mismatch vs reference: max |diff| = {max_diff}"

    print("KERNEL_OK")
</pallas_src>

<mosaic_0001>
module attributes {stable_mosaic.version = 11 : i64} {
  func.func @kernel(%arg0: i32, %arg1: memref<1x2048x128xf32, #tpu.memory_space<vmem>>, %arg2: memref<32x2048xbf16, #tpu.memory_space<vmem>>, %arg3: memref<32x1xf32, #tpu.memory_space<vmem>>, %arg4: memref<3x32x96xbf16, #tpu.memory_space<vmem>>, %arg5: memref<3x32x1xf32, #tpu.memory_space<vmem>>, %arg6: memref<3x32x32xbf16, #tpu.memory_space<vmem>>, %arg7: memref<3x32x1xf32, #tpu.memory_space<vmem>>, %arg8: memref<8x32xbf16, #tpu.memory_space<vmem>>, %arg9: memref<8x1xf32, #tpu.memory_space<vmem>>, %arg10: memref<1x8x128xf32, #tpu.memory_space<vmem>>) attributes {dimension_semantics = [#tpu.dimension_semantics<parallel>], iteration_bounds = array<i64: 2>, scalar_prefetch = 0 : i64, scratch_operands = 0 : i64, tpu.core_type = #tpu.core_type<tc>, window_params = [{transform_indices = @transform_0, window_bounds = array<i64: 1, 2048, 128>}, {pipeline_mode = #tpu.pipeline_mode<synchronous>, transform_indices = @transform_1, window_bounds = array<i64: 32, 2048>}, {pipeline_mode = #tpu.pipeline_mode<synchronous>, transform_indices = @transform_2, window_bounds = array<i64: 32, 1>}, {pipeline_mode = #tpu.pipeline_mode<synchronous>, transform_indices = @transform_3, window_bounds = array<i64: 3, 32, 96>}, {pipeline_mode = #tpu.pipeline_mode<synchronous>, transform_indices = @transform_4, window_bounds = array<i64: 3, 32, 1>}, {pipeline_mode = #tpu.pipeline_mode<synchronous>, transform_indices = @transform_5, window_bounds = array<i64: 3, 32, 32>}, {pipeline_mode = #tpu.pipeline_mode<synchronous>, transform_indices = @transform_6, window_bounds = array<i64: 3, 32, 1>}, {pipeline_mode = #tpu.pipeline_mode<synchronous>, transform_indices = @transform_7, window_bounds = array<i64: 8, 32>}, {pipeline_mode = #tpu.pipeline_mode<synchronous>, transform_indices = @transform_8, window_bounds = array<i64: 8, 1>}, {transform_indices = @transform_9, window_bounds = array<i64: 1, 8, 128>}]} {
    %c0 = arith.constant 0 : index
    %c0_0 = arith.constant 0 : index
    %c0_1 = arith.constant 0 : index
    %0 = vector.load %arg1[%c0, %c0_0, %c0_1] : memref<1x2048x128xf32, #tpu.memory_space<vmem>>, vector<1x2048x128xf32>
    %1 = vector.shape_cast %0 : vector<1x2048x128xf32> to vector<2048x128xf32>
    %2 = arith.truncf %1 : vector<2048x128xf32> to vector<2048x128xbf16>
    %c0_2 = arith.constant 0 : index
    %c0_3 = arith.constant 0 : index
    %3 = vector.load %arg2[%c0_2, %c0_3] : memref<32x2048xbf16, #tpu.memory_space<vmem>>, vector<32x2048xbf16>
    %cst = arith.constant dense<0.000000e+00> : vector<32x128xf32>
    %4 = tpu.matmul %3, %2, %cst {dimension_numbers = #tpu.dot_dimension_numbers<[1], [0], [0], [1], [0, 0, 1, 1], [], []>} : vector<32x2048xbf16>, vector<2048x128xbf16>, vector<32x128xf32> -> vector<32x128xf32>
    %c0_4 = arith.constant 0 : index
    %c0_5 = arith.constant 0 : index
    %5 = vector.load %arg3[%c0_4, %c0_5] : memref<32x1xf32, #tpu.memory_space<vmem>>, vector<32x1xf32>
    %6 = vector.broadcast %5 : vector<32x1xf32> to vector<32x128xf32>
    %7 = arith.addf %4, %6 : vector<32x128xf32>
    %8 = tpu.iota {dimensions = array<i32: 1>} : vector<32x128xi32>
    %c16_i32 = arith.constant 16 : i32
    %9 = vector.broadcast %c16_i32 : i32 to vector<32x128xi32>
    %10 = arith.cmpi slt, %8, %9 : vector<32x128xi32>
    %cst_6 = arith.constant 0.000000e+00 : f32
    %11 = vector.broadcast %cst_6 : f32 to vector<32x128xf32>
    %12 = arith.select %10, %7, %11 : vector<32x128xi1>, vector<32x128xf32>
    %c1_i32 = arith.constant 1 : i32
    %13 = tpu.dynamic_rotate %12 by %c1_i32 dim 1 : vector<32x128xf32>, i32 -> vector<32x128xf32>
    %c127_i32 = arith.constant 127 : i32
    %14 = tpu.dynamic_rotate %12 by %c127_i32 dim 1 : vector<32x128xf32>, i32 -> vector<32x128xf32>
    %15 = tpu.concatenate %13, %12, %14 in 0 : vector<32x128xf32>, vector<32x128xf32>, vector<32x128xf32> -> vector<96x128xf32>
    %16 = arith.truncf %15 : vector<96x128xf32> to vector<96x128xbf16>
    %c0_7 = arith.constant 0 : index
    %c0_8 = arith.constant 0 : index
    %c0_9 = arith.constant 0 : index
    %17 = vector.load %arg4[%c0_7, %c0_8, %c0_9] : memref<3x32x96xbf16, #tpu.memory_space<vmem>>, vector<1x32x96xbf16>
    %18 = vector.shape_cast %17 : vector<1x32x96xbf16> to vector<32x96xbf16>
    %cst_10 = arith.constant dense<0.000000e+00> : vector<32x128xf32>
    %19 = tpu.matmul %18, %16, %cst_10 {dimension_numbers = #tpu.dot_dimension_numbers<[1], [0], [0], [1], [0, 0, 1, 1], [], []>} : vector<32x96xbf16>, vector<96x128xbf16>, vector<32x128xf32> -> vector<32x128xf32>
    %c0_11 = arith.constant 0 : index
    %c0_12 = arith.constant 0 : index
    %c0_13 = arith.constant 0 : index
    %20 = vector.load %arg5[%c0_11, %c0_12, %c0_13] : memref<3x32x1xf32, #tpu.memory_space<vmem>>, vector<1x32x1xf32>
    %21 = vector.shape_cast %20 : vector<1x32x1xf32> to vector<32x1xf32>
    %22 = vector.broadcast %21 : vector<32x1xf32> to vector<32x128xf32>
    %23 = arith.addf %19, %22 : vector<32x128xf32>
    %cst_14 = arith.constant 0.000000e+00 : f32
    %24 = vector.broadcast %cst_14 : f32 to vector<32x128xf32>
    %25 = arith.maximumf %23, %24 : vector<32x128xf32>
    %c0_15 = arith.constant 0 : index
    %c0_16 = arith.constant 0 : index
    %c0_17 = arith.constant 0 : index
    %26 = vector.load %arg6[%c0_15, %c0_16, %c0_17] : memref<3x32x32xbf16, #tpu.memory_space<vmem>>, vector<1x32x32xbf16>
    %27 = vector.shape_cast %26 : vector<1x32x32xbf16> to vector<32x32xbf16>
    %28 = arith.truncf %25 : vector<32x128xf32> to vector<32x128xbf16>
    %cst_18 = arith.constant dense<0.000000e+00> : vector<32x128xf32>
    %29 = tpu.matmul %27, %28, %cst_18 {dimension_numbers = #tpu.dot_dimension_numbers<[1], [0], [0], [1], [0, 0, 1, 1], [], []>} : vector<32x32xbf16>, vector<32x128xbf16>, vector<32x128xf32> -> vector<32x128xf32>
    %c0_19 = arith.constant 0 : index
    %c0_20 = arith.constant 0 : index
    %c0_21 = arith.constant 0 : index
    %30 = vector.load %arg7[%c0_19, %c0_20, %c0_21] : memref<3x32x1xf32, #tpu.memory_space<vmem>>, vector<1x32x1xf32>
    %31 = vector.shape_cast %30 : vector<1x32x1xf32> to vector<32x1xf32>
    %32 = vector.broadcast %31 : vector<32x1xf32> to vector<32x128xf32>
    %33 = arith.addf %29, %32 : vector<32x128xf32>
    %34 = arith.addf %33, %7 : vector<32x128xf32>
    %cst_22 = arith.constant 0.000000e+00 : f32
    %35 = vector.broadcast %cst_22 : f32 to vector<32x128xf32>
    %36 = arith.select %10, %34, %35 : vector<32x128xi1>, vector<32x128xf32>
    %c2_i32 = arith.constant 2 : i32
    %37 = tpu.dynamic_rotate %36 by %c2_i32 dim 1 : vector<32x128xf32>, i32 -> vector<32x128xf32>
    %c126_i32 = arith.constant 126 : i32
    %38 = tpu.dynamic_rotate %36 by %c126_i32 dim 1 : vector<32x128xf32>, i32 -> vector<32x128xf32>
    %39 = tpu.concatenate %37, %36, %38 in 0 : vector<32x128xf32>, vector<32x128xf32>, vector<32x128xf32> -> vector<96x128xf32>
    %40 = arith.truncf %39 : vector<96x128xf32> to vector<96x128xbf16>
    %c1 = arith.constant 1 : index
    %c0_23 = arith.constant 0 : index
    %c0_24 = arith.constant 0 : index
    %41 = vector.load %arg4[%c1, %c0_23, %c0_24] : memref<3x32x96xbf16, #tpu.memory_space<vmem>>, vector<1x32x96xbf16>
    %42 = vector.shape_cast %41 : vector<1x32x96xbf16> to vector<32x96xbf16>
    %cst_25 = arith.constant dense<0.000000e+00> : vector<32x128xf32>
    %43 = tpu.matmul %42, %40, %cst_25 {dimension_numbers = #tpu.dot_dimension_numbers<[1], [0], [0], [1], [0, 0, 1, 1], [], []>} : vector<32x96xbf16>, vector<96x128xbf16>, vector<32x128xf32> -> vector<32x128xf32>
    %c1_26 = arith.constant 1 : index
    %c0_27 = arith.constant 0 : index
    %c0_28 = arith.constant 0 : index
    %44 = vector.load %arg5[%c1_26, %c0_27, %c0_28] : memref<3x32x1xf32, #tpu.memory_space<vmem>>, vector<1x32x1xf32>
    %45 = vector.shape_cast %44 : vector<1x32x1xf32> to vector<32x1xf32>
    %46 = vector.broadcast %45 : vector<32x1xf32> to vector<32x128xf32>
    %47 = arith.addf %43, %46 : vector<32x128xf32>
    %cst_29 = arith.constant 0.000000e+00 : f32
    %48 = vector.broadcast %cst_29 : f32 to vector<32x128xf32>
    %49 = arith.maximumf %47, %48 : vector<32x128xf32>
    %c1_30 = arith.constant 1 : index
    %c0_31 = arith.constant 0 : index
    %c0_32 = arith.constant 0 : index
    %50 = vector.load %arg6[%c1_30, %c0_31, %c0_32] : memref<3x32x32xbf16, #tpu.memory_space<vmem>>, vector<1x32x32xbf16>
    %51 = vector.shape_cast %50 : vector<1x32x32xbf16> to vector<32x32xbf16>
    %52 = arith.truncf %49 : vector<32x128xf32> to vector<32x128xbf16>
    %cst_33 = arith.constant dense<0.000000e+00> : vector<32x128xf32>
    %53 = tpu.matmul %51, %52, %cst_33 {dimension_numbers = #tpu.dot_dimension_numbers<[1], [0], [0], [1], [0, 0, 1, 1], [], []>} : vector<32x32xbf16>, vector<32x128xbf16>, vector<32x128xf32> -> vector<32x128xf32>
    %c1_34 = arith.constant 1 : index
    %c0_35 = arith.constant 0 : index
    %c0_36 = arith.constant 0 : index
    %54 = vector.load %arg7[%c1_34, %c0_35, %c0_36] : memref<3x32x1xf32, #tpu.memory_space<vmem>>, vector<1x32x1xf32>
    %55 = vector.shape_cast %54 : vector<1x32x1xf32> to vector<32x1xf32>
    %56 = vector.broadcast %55 : vector<32x1xf32> to vector<32x128xf32>
    %57 = arith.addf %53, %56 : vector<32x128xf32>
    %58 = arith.addf %57, %34 : vector<32x128xf32>
    %cst_37 = arith.constant 0.000000e+00 : f32
    %59 = vector.broadcast %cst_37 : f32 to vector<32x128xf32>
    %60 = arith.select %10, %58, %59 : vector<32x128xi1>, vector<32x128xf32>
    %c3_i32 = arith.constant 3 : i32
    %61 = tpu.dynamic_rotate %60 by %c3_i32 dim 1 : vector<32x128xf32>, i32 -> vector<32x128xf32>
    %c125_i32 = arith.constant 125 : i32
    %62 = tpu.dynamic_rotate %60 by %c125_i32 dim 1 : vector<32x128xf32>, i32 -> vector<32x128xf32>
    %63 = tpu.concatenate %61, %60, %62 in 0 : vector<32x128xf32>, vector<32x128xf32>, vector<32x128xf32> -> vector<96x128xf32>
    %64 = arith.truncf %63 : vector<96x128xf32> to vector<96x128xbf16>
    %c2 = arith.constant 2 : index
    %c0_38 = arith.constant 0 : index
    %c0_39 = arith.constant 0 : index
    %65 = vector.load %arg4[%c2, %c0_38, %c0_39] : memref<3x32x96xbf16, #tpu.memory_space<vmem>>, vector<1x32x96xbf16>
    %66 = vector.shape_cast %65 : vector<1x32x96xbf16> to vector<32x96xbf16>
    %cst_40 = arith.constant dense<0.000000e+00> : vector<32x128xf32>
    %67 = tpu.matmul %66, %64, %cst_40 {dimension_numbers = #tpu.dot_dimension_numbers<[1], [0], [0], [1], [0, 0, 1, 1], [], []>} : vector<32x96xbf16>, vector<96x128xbf16>, vector<32x128xf32> -> vector<32x128xf32>
    %c2_41 = arith.constant 2 : index
    %c0_42 = arith.constant 0 : index
    %c0_43 = arith.constant 0 : index
    %68 = vector.load %arg5[%c2_41, %c0_42, %c0_43] : memref<3x32x1xf32, #tpu.memory_space<vmem>>, vector<1x32x1xf32>
    %69 = vector.shape_cast %68 : vector<1x32x1xf32> to vector<32x1xf32>
    %70 = vector.broadcast %69 : vector<32x1xf32> to vector<32x128xf32>
    %71 = arith.addf %67, %70 : vector<32x128xf32>
    %cst_44 = arith.constant 0.000000e+00 : f32
    %72 = vector.broadcast %cst_44 : f32 to vector<32x128xf32>
    %73 = arith.maximumf %71, %72 : vector<32x128xf32>
    %c2_45 = arith.constant 2 : index
    %c0_46 = arith.constant 0 : index
    %c0_47 = arith.constant 0 : index
    %74 = vector.load %arg6[%c2_45, %c0_46, %c0_47] : memref<3x32x32xbf16, #tpu.memory_space<vmem>>, vector<1x32x32xbf16>
    %75 = vector.shape_cast %74 : vector<1x32x32xbf16> to vector<32x32xbf16>
    %76 = arith.truncf %73 : vector<32x128xf32> to vector<32x128xbf16>
    %cst_48 = arith.constant dense<0.000000e+00> : vector<32x128xf32>
    %77 = tpu.matmul %75, %76, %cst_48 {dimension_numbers = #tpu.dot_dimension_numbers<[1], [0], [0], [1], [0, 0, 1, 1], [], []>} : vector<32x32xbf16>, vector<32x128xbf16>, vector<32x128xf32> -> vector<32x128xf32>
    %c2_49 = arith.constant 2 : index
    %c0_50 = arith.constant 0 : index
    %c0_51 = arith.constant 0 : index
    %78 = vector.load %arg7[%c2_49, %c0_50, %c0_51] : memref<3x32x1xf32, #tpu.memory_space<vmem>>, vector<1x32x1xf32>
    %79 = vector.shape_cast %78 : vector<1x32x1xf32> to vector<32x1xf32>
    %80 = vector.broadcast %79 : vector<32x1xf32> to vector<32x128xf32>
    %81 = arith.addf %77, %80 : vector<32x128xf32>
    %82 = arith.addf %81, %58 : vector<32x128xf32>
    %c0_52 = arith.constant 0 : index
    %c0_53 = arith.constant 0 : index
    %83 = vector.load %arg8[%c0_52, %c0_53] : memref<8x32xbf16, #tpu.memory_space<vmem>>, vector<8x32xbf16>
    %84 = arith.truncf %82 : vector<32x128xf32> to vector<32x128xbf16>
    %cst_54 = arith.constant dense<0.000000e+00> : vector<8x128xf32>
    %85 = tpu.matmul %83, %84, %cst_54 {dimension_numbers = #tpu.dot_dimension_numbers<[1], [0], [0], [1], [0, 0, 1, 1], [], []>} : vector<8x32xbf16>, vector<32x128xbf16>, vector<8x128xf32> -> vector<8x128xf32>
    %c0_55 = arith.constant 0 : index
    %c0_56 = arith.constant 0 : index
    %86 = vector.load %arg9[%c0_55, %c0_56] : memref<8x1xf32, #tpu.memory_space<vmem>>, vector<8x1xf32>
    %87 = vector.broadcast %86 : vector<8x1xf32> to vector<8x128xf32>
    %88 = arith.addf %85, %87 : vector<8x128xf32>
    %c0_57 = arith.constant 0 : index
    %c0_58 = arith.constant 0 : index
    %c0_59 = arith.constant 0 : index
    %89 = vector.load %arg10[%c0_57, %c0_58, %c0_59] : memref<1x8x128xf32, #tpu.memory_space<vmem>>, vector<1x8x128xf32>
    %90 = vector.shape_cast %89 : vector<1x8x128xf32> to vector<8x128xf32>
    %91 = vector.shape_cast %88 : vector<8x128xf32> to vector<1x8x128xf32>
    tpu.vector_store %arg10[%c0_57, %c0_58, %c0_59], %91 {strides = array<i32>} : memref<1x8x128xf32, #tpu.memory_space<vmem>>, vector<1x8x128xf32>,
    return
  }
  func.func @transform_0(%arg0: i32) -> (i32, i32, i32) {
    %c0_i32 = arith.constant 0 : i32
    %c0_i32_0 = arith.constant 0 : i32
    %c0_i32_1 = arith.constant 0 : i32
    return %arg0, %c0_i32, %c0_i32_0 : i32, i32, i32
  }
  func.func @transform_1(%arg0: i32) -> (i32, i32) {
    %c0_i32 = arith.constant 0 : i32
    %c0_i32_0 = arith.constant 0 : i32
    %c0_i32_1 = arith.constant 0 : i32
    return %c0_i32, %c0_i32_0 : i32, i32
  }
  func.func @transform_2(%arg0: i32) -> (i32, i32) {
    %c0_i32 = arith.constant 0 : i32
    %c0_i32_0 = arith.constant 0 : i32
    %c0_i32_1 = arith.constant 0 : i32
    return %c0_i32, %c0_i32_0 : i32, i32
  }
  func.func @transform_3(%arg0: i32) -> (i32, i32, i32) {
    %c0_i32 = arith.constant 0 : i32
    %c0_i32_0 = arith.constant 0 : i32
    %c0_i32_1 = arith.constant 0 : i32
    %c0_i32_2 = arith.constant 0 : i32
    return %c0_i32, %c0_i32_0, %c0_i32_1 : i32, i32, i32
  }
  func.func @transform_4(%arg0: i32) -> (i32, i32, i32) {
    %c0_i32 = arith.constant 0 : i32
    %c0_i32_0 = arith.constant 0 : i32
    %c0_i32_1 = arith.constant 0 : i32
    %c0_i32_2 = arith.constant 0 : i32
    return %c0_i32, %c0_i32_0, %c0_i32_1 : i32, i32, i32
  }
  func.func @transform_5(%arg0: i32) -> (i32, i32, i32) {
    %c0_i32 = arith.constant 0 : i32
    %c0_i32_0 = arith.constant 0 : i32
    %c0_i32_1 = arith.constant 0 : i32
    %c0_i32_2 = arith.constant 0 : i32
    return %c0_i32, %c0_i32_0, %c0_i32_1 : i32, i32, i32
  }
  func.func @transform_6(%arg0: i32) -> (i32, i32, i32) {
    %c0_i32 = arith.constant 0 : i32
    %c0_i32_0 = arith.constant 0 : i32
    %c0_i32_1 = arith.constant 0 : i32
    %c0_i32_2 = arith.constant 0 : i32
    return %c0_i32, %c0_i32_0, %c0_i32_1 : i32, i32, i32
  }
  func.func @transform_7(%arg0: i32) -> (i32, i32) {
    %c0_i32 = arith.constant 0 : i32
    %c0_i32_0 = arith.constant 0 : i32
    %c0_i32_1 = arith.constant 0 : i32
    return %c0_i32, %c0_i32_0 : i32, i32
  }
  func.func @transform_8(%arg0: i32) -> (i32, i32) {
    %c0_i32 = arith.constant 0 : i32
    %c0_i32_0 = arith.constant 0 : i32
    %c0_i32_1 = arith.constant 0 : i32
    return %c0_i32, %c0_i32_0 : i32, i32
  }
  func.func @transform_9(%arg0: i32) -> (i32, i32, i32) {
    %c0_i32 = arith.constant 0 : i32
    %c0_i32_0 = arith.constant 0 : i32
    %c0_i32_1 = arith.constant 0 : i32
    return %arg0, %c0_i32, %c0_i32_0 : i32, i32, i32
  }
}

</mosaic_0001>

<llo_original>
// kernel: tpu_custom_call.1
$region0: #{tpu_custom_call.1}
  #allocation0 [shape = 'u32[]', space=smem, size = 0x4, offset = 0x4, fixed_abs, tag = 'smem constant byte address 0x4 - core index']
  #allocation1 [shape = 'u32[144,128]{1,0:T(1,128)}', space=vmem, size = 0x12000, scoped, tag = 'internal scratch']
  %s0 = inlined_call_operand.hbm [shape: f32[2,2048,128], index: 0, kind: input, shape index: {}]
  %s1 = inlined_call_operand.hbm [shape: bf16[32,2048], index: 1, kind: input, shape index: {}]
  %s2 = inlined_call_operand.vmem [shape: f32[32,1], index: 2, kind: input, shape index: {}]
  %s3 = inlined_call_operand.hbm [shape: bf16[3,32,96], index: 3, kind: input, shape index: {}]
  %s4 = inlined_call_operand.vmem [shape: f32[3,32,1], index: 4, kind: input, shape index: {}]
  %s5 = inlined_call_operand.hbm [shape: bf16[3,32,32], index: 5, kind: input, shape index: {}]
  %s6 = inlined_call_operand.vmem [shape: f32[3,32,1], index: 6, kind: input, shape index: {}]
  %s7 = inlined_call_operand.hbm [shape: bf16[8,32], index: 7, kind: input, shape index: {}]
  %s8 = inlined_call_operand.vmem [shape: f32[8,1], index: 8, kind: input, shape index: {}]
  %s9 = inlined_call_operand.hbm [shape: f32[2,8,128], index: 9, kind: output, shape index: {}]
  %s10 = sld [smem:[#allocation0]]
  $region89: #{tpu_custom_call.1} parent=0
    _
  %s12 = ssub.s32 1, %s10
  %s13 = scalar_select 0, %s12, %s10
  $region1: #{tpu_custom_call.1} parent=0
    #allocation2 [shape = 'u8[2097152]{0}', space=vmem, size = 0x200000, scoped, tag = 'input window, operand 0']
    #allocation3 [shape = 's32[2]{0}', space=sflag, size = 0x8, scoped, tag = 'scoped memory for tpu_custom_call.1']
    #allocation4 [shape = 's32[2]{0}', space=sflag, size = 0x8, scoped, tag = 'scoped memory for tpu_custom_call.1']
    #allocation5 [shape = 'u8[131072]{0}', space=vmem, size = 0x20000, scoped, tag = 'input window, operand 1, single buffered']
    #allocation6 [shape = 's32[1]{0}', space=sflag, size = 0x4, scoped, tag = 'scoped memory for tpu_custom_call.1']
    #allocation7 [shape = 'u8[24576]{0}', space=vmem, size = 0x6000, scoped, tag = 'input window, operand 3, single buffered']
    #allocation8 [shape = 'u8[24576]{0}', space=vmem, size = 0x6000, scoped, tag = 'input window, operand 5, single buffered']
    #allocation9 [shape = 's32[1]{0}', space=sflag, size = 0x4, scoped, tag = 'scoped memory for tpu_custom_call.1']
    #allocation10 [shape = 'u8[2048]{0}', space=vmem, size = 0x800, scoped, tag = 'input window, operand 7, single buffered']
    #allocation11 [shape = 'u8[8192]{0}', space=vmem, size = 0x2000, scoped, tag = 'output window, operand 0']
    %14 = vsyncpa [#allocation3], 0
    %s15 = scalar_lea.sflag [#allocation3], 1
    %16 = vsyncpa %s15, 0
    %17 = vsyncpa [#allocation6], 0
    %18 = vsyncpa [#allocation9], 0
    %19 = vsyncpa [#allocation4], 0
    %s20 = scalar_lea.sflag [#allocation4], 1
    %21 = vsyncpa %s20, 0
    loop: start=0, step=1, limit=4
    $region2: #{tpu_custom_call.1} parent=1 // loop_pre_header
      _
    $region3: #{tpu_custom_call.1} parent=1 // loop_header
      %s23 = sphi 0, %s27
      %p24 = scmp.ge.s32.totalorder %s23, 4
      %s33 = sphi 0, %s35
      %s36 = sphi 0, %s33
      %s37 = sphi 0, %s36
      %s53 = sphi 0, %s37
      %s57 = sphi 0, %s57
      %s59 = sphi 0, %s57
      %s60 = sphi 0, %s59
      %s74 = sphi 0, %s60
      %s78 = sphi 0, %s78
      %s80 = sphi 0, %s78
      %s81 = sphi 0, %s80
      %s95 = sphi 0, %s81
      %s99 = sphi 0, %s99
      %s101 = sphi 0, %s99
      %s102 = sphi 0, %s101
      %s116 = sphi 0, %s102
      %s120 = sphi 0, %s120
      %s122 = sphi 0, %s120
      %s123 = sphi 0, %s122
      %s137 = sphi 0, %s123
      %s141 = sphi 0, %s141
      %s143 = sphi 0, %s141
      %s144 = sphi 0, %s143
      %s158 = sphi 0, %s144
      %s162 = sphi 0, %s162
      %s164 = sphi 0, %s162
      %s165 = sphi 0, %s164
      %s179 = sphi 0, %s165
      %s183 = sphi 0, %s183
      %s185 = sphi 0, %s183
      %s186 = sphi 0, %s185
      %s200 = sphi 0, %s186
      %s204 = sphi 0, %s204
      %s206 = sphi 0, %s204
      %s207 = sphi 0, %s206
      %s221 = sphi 0, %s207
      %s227 = sphi 0, %s229
      %s230 = sphi 0, %s227
      %s231 = sphi 0, %s230
      %s247 = sphi 0, %s231
    $region4: #{tpu_custom_call.1} parent=1 // loop_header_branch
      %26 = sbr.rel (%p24) target = $region8
    $region5: #{tpu_custom_call.1} parent=1 // loop_body
      %s28 = ssub.s32 %s23, 1
      %s29 = ssub.s32 %s23, 2
      %s30 = sadd.s32 %s23, 1
      %s31 = ssub.s32 %s23, %s30
      %p32 = scmp.eq.s32.totalorder %s31, 0
      %s34 = sadd.s32 %s33, 1
      %s35 = scalar_select %p32, %s33, %s34
      %p38 = pneg %p32
      %p39 = scmp.eq.s32.totalorder %s23, 1
      %p40 = por %p38, %p39
      %p41 = scmp.ne.s32.totalorder %s33, %s36
      %p42 = scmp.eq.s32.totalorder %s23, 0
      %p43 = por %p41, %p42
      %p44 = scmp.ne.s32.totalorder %s33, %s36
      %p45 = scmp.eq.s32.totalorder %s28, 1
      %p46 = por %p44, %p45
      %p47 = scmp.ne.s32.totalorder %s36, %s37
      %p48 = scmp.eq.s32.totalorder %s28, 0
      %p49 = por %p47, %p48
      %p50 = scmp.ne.s32.totalorder %s36, %s37
      %p51 = scmp.eq.s32.totalorder %s29, 1
      %p52 = por %p50, %p51
      %p54 = scmp.ne.s32.totalorder %s37, %s53
      %p55 = scmp.eq.s32.totalorder %s29, 0
      %p56 = por %p54, %p55
      %s58 = sadd.s32 %s57, 1
      %p61 = scmp.eq.s32.totalorder %s23, 1
      %p62 = scmp.ne.s32.totalorder %s57, %s59
      %p63 = scmp.eq.s32.totalorder %s23, 0
      %p64 = por %p62, %p63
      %p65 = scmp.ne.s32.totalorder %s57, %s59
      %p66 = scmp.eq.s32.totalorder %s28, 1
      %p67 = por %p65, %p66
      %p68 = scmp.ne.s32.totalorder %s59, %s60
      %p69 = scmp.eq.s32.totalorder %s28, 0
      %p70 = por %p68, %p69
      %p71 = scmp.ne.s32.totalorder %s59, %s60
      %p72 = scmp.eq.s32.totalorder %s29, 1
      %p73 = por %p71, %p72
      %p75 = scmp.ne.s32.totalorder %s60, %s74
      %p76 = scmp.eq.s32.totalorder %s29, 0
      %p77 = por %p75, %p76
      %s79 = sadd.s32 %s78, 1
      %p82 = scmp.eq.s32.totalorder %s23, 1
      %p83 = scmp.ne.s32.totalorder %s78, %s80
      %p84 = scmp.eq.s32.totalorder %s23, 0
      %p85 = por %p83, %p84
      %p86 = scmp.ne.s32.totalorder %s78, %s80
      %p87 = scmp.eq.s32.totalorder %s28, 1
      %p88 = por %p86, %p87
      %p89 = scmp.ne.s32.totalorder %s80, %s81
      %p90 = scmp.eq.s32.totalorder %s28, 0
      %p91 = por %p89, %p90
      %p92 = scmp.ne.s32.totalorder %s80, %s81
      %p93 = scmp.eq.s32.totalorder %s29, 1
      %p94 = por %p92, %p93
      %p96 = scmp.ne.s32.totalorder %s81, %s95
      %p97 = scmp.eq.s32.totalorder %s29, 0
      %p98 = por %p96, %p97
      %s100 = sadd.s32 %s99, 1
      %p103 = scmp.eq.s32.totalorder %s23, 1
      %p104 = scmp.ne.s32.totalorder %s99, %s101
      %p105 = scmp.eq.s32.totalorder %s23, 0
      %p106 = por %p104, %p105
      %p107 = scmp.ne.s32.totalorder %s99, %s101
      %p108 = scmp.eq.s32.totalorder %s28, 1
      %p109 = por %p107, %p108
      %p110 = scmp.ne.s32.totalorder %s101, %s102
      %p111 = scmp.eq.s32.totalorder %s28, 0
      %p112 = por %p110, %p111
      %p113 = scmp.ne.s32.totalorder %s101, %s102
      %p114 = scmp.eq.s32.totalorder %s29, 1
      %p115 = por %p113, %p114
      %p117 = scmp.ne.s32.totalorder %s102, %s116
      %p118 = scmp.eq.s32.totalorder %s29, 0
      %p119 = por %p117, %p118
      %s121 = sadd.s32 %s120, 1
      %p124 = scmp.eq.s32.totalorder %s23, 1
      %p125 = scmp.ne.s32.totalorder %s120, %s122
      %p126 = scmp.eq.s32.totalorder %s23, 0
      %p127 = por %p125, %p126
      %p128 = scmp.ne.s32.totalorder %s120, %s122
      %p129 = scmp.eq.s32.totalorder %s28, 1
      %p130 = por %p128, %p129
      %p131 = scmp.ne.s32.totalorder %s122, %s123
      %p132 = scmp.eq.s32.totalorder %s28, 0
      %p133 = por %p131, %p132
      %p134 = scmp.ne.s32.totalorder %s122, %s123
      %p135 = scmp.eq.s32.totalorder %s29, 1
      %p136 = por %p134, %p135
      %p138 = scmp.ne.s32.totalorder %s123, %s137
      %p139 = scmp.eq.s32.totalorder %s29, 0
      %p140 = por %p138, %p139
      %s142 = sadd.s32 %s141, 1
      %p145 = scmp.eq.s32.totalorder %s23, 1
      %p146 = scmp.ne.s32.totalorder %s141, %s143
      %p147 = scmp.eq.s32.totalorder %s23, 0
      %p148 = por %p146, %p147
      %p149 = scmp.ne.s32.totalorder %s141, %s143
      %p150 = scmp.eq.s32.totalorder %s28, 1
      %p151 = por %p149, %p150
      %p152 = scmp.ne.s32.totalorder %s143, %s144
      %p153 = scmp.eq.s32.totalorder %s28, 0
      %p154 = por %p152, %p153
      %p155 = scmp.ne.s32.totalorder %s143, %s144
      %p156 = scmp.eq.s32.totalorder %s29, 1
      %p157 = por %p155, %p156
      %p159 = scmp.ne.s32.totalorder %s144, %s158
      %p160 = scmp.eq.s32.totalorder %s29, 0
      %p161 = por %p159, %p160
      %s163 = sadd.s32 %s162, 1
      %p166 = scmp.eq.s32.totalorder %s23, 1
      %p167 = scmp.ne.s32.totalorder %s162, %s164
      %p168 = scmp.eq.s32.totalorder %s23, 0
      %p169 = por %p167, %p168
      %p170 = scmp.ne.s32.totalorder %s162, %s164
      %p171 = scmp.eq.s32.totalorder %s28, 1
      %p172 = por %p170, %p171
      %p173 = scmp.ne.s32.totalorder %s164, %s165
      %p174 = scmp.eq.s32.totalorder %s28, 0
      %p175 = por %p173, %p174
      %p176 = scmp.ne.s32.totalorder %s164, %s165
      %p177 = scmp.eq.s32.totalorder %s29, 1
      %p178 = por %p176, %p177
      %p180 = scmp.ne.s32.totalorder %s165, %s179
      %p181 = scmp.eq.s32.totalorder %s29, 0
      %p182 = por %p180, %p181
      %s184 = sadd.s32 %s183, 1
      %p187 = scmp.eq.s32.totalorder %s23, 1
      %p188 = scmp.ne.s32.totalorder %s183, %s185
      %p189 = scmp.eq.s32.totalorder %s23, 0
      %p190 = por %p188, %p189
      %p191 = scmp.ne.s32.totalorder %s183, %s185
      %p192 = scmp.eq.s32.totalorder %s28, 1
      %p193 = por %p191, %p192
      %p194 = scmp.ne.s32.totalorder %s185, %s186
      %p195 = scmp.eq.s32.totalorder %s28, 0
      %p196 = por %p194, %p195
      %p197 = scmp.ne.s32.totalorder %s185, %s186
      %p198 = scmp.eq.s32.totalorder %s29, 1
      %p199 = por %p197, %p198
      %p201 = scmp.ne.s32.totalorder %s186, %s200
      %p202 = scmp.eq.s32.totalorder %s29, 0
      %p203 = por %p201, %p202
      %s205 = sadd.s32 %s204, 1
      %p208 = scmp.eq.s32.totalorder %s23, 1
      %p209 = scmp.ne.s32.totalorder %s204, %s206
      %p210 = scmp.eq.s32.totalorder %s23, 0
      %p211 = por %p209, %p210
      %p212 = scmp.ne.s32.totalorder %s204, %s206
      %p213 = scmp.eq.s32.totalorder %s28, 1
      %p214 = por %p212, %p213
      %p215 = scmp.ne.s32.totalorder %s206, %s207
      %p216 = scmp.eq.s32.totalorder %s28, 0
      %p217 = por %p215, %p216
      %p218 = scmp.ne.s32.totalorder %s206, %s207
      %p219 = scmp.eq.s32.totalorder %s29, 1
      %p220 = por %p218, %p219
      %p222 = scmp.ne.s32.totalorder %s207, %s221
      %p223 = scmp.eq.s32.totalorder %s29, 0
      %p224 = por %p222, %p223
      %s225 = ssub.s32 %s23, %s30
      %p226 = scmp.eq.s32.totalorder %s225, 0
      %s228 = sadd.s32 %s227, 1
      %s229 = scalar_select %p226, %s227, %s228
      %p232 = pneg %p226
      %p233 = scmp.eq.s32.totalorder %s23, 1
      %p234 = por %p232, %p233
      %p235 = scmp.ne.s32.totalorder %s227, %s230
      %p236 = scmp.eq.s32.totalorder %s23, 0
      %p237 = por %p235, %p236
      %p238 = scmp.ne.s32.totalorder %s227, %s230
      %p239 = scmp.eq.s32.totalorder %s28, 1
      %p240 = por %p238, %p239
      %p241 = scmp.ne.s32.totalorder %s230, %s231
      %p242 = scmp.eq.s32.totalorder %s28, 0
      %p243 = por %p241, %p242
      %p244 = scmp.ne.s32.totalorder %s230, %s231
      %p245 = scmp.eq.s32.totalorder %s29, 1
      %p246 = por %p244, %p245
      %p248 = scmp.ne.s32.totalorder %s231, %s247
      %p249 = scmp.eq.s32.totalorder %s29, 0
      %p250 = por %p248, %p249
      %p251 = scmp.le.s32.totalorder 1, %s23
      %p252 = scmp.lt.s32.totalorder %s23, 3
      %p253 = pnand %p251, %p252
      %p254 = pneg %p253
      // Predicated region
      $region9: #{tpu_custom_call.1} parent=5 // pred_check
        _
      $region10: #{tpu_custom_call.1} parent=5 // pred_check_branch
        %256 = sbr.rel (%p253) target = $region12
      $region11: #{tpu_custom_call.1} parent=5 // pred_region
        %s257 = ssub.s32 %s23, 1
        // Predicated region
        $region13: #{tpu_custom_call.1} parent=11 // pred_check
          %p258 = pneg %p70
        $region14: #{tpu_custom_call.1} parent=11 // pred_check_branch
          %260 = sbr.rel (%p258) target = $region16
        $region15: #{tpu_custom_call.1} parent=11 // pred_region
          %s262 = ssub.s32 4096, 4096
          %263 = vsyncadd [#allocation6], %s262
          %s264 = sshll.u32 [#allocation5], 4
          %s265 = int_to_ptr.vmem [resolvable:$true] %s264
          %270 = dma.hbm_to_vmem [thread:$0]  %s1, 4096, %s265, [#allocation6], 1024, 1024, 64
        $region16: #{tpu_custom_call.1} parent=11 // pred_fallthru
          _
        // Predicated region
        $region17: #{tpu_custom_call.1} parent=11 // pred_check
          %p271 = pneg %p91
        $region18: #{tpu_custom_call.1} parent=11 // pred_check_branch
          %273 = sbr.rel (%p271) target = $region20
        $region19: #{tpu_custom_call.1} parent=11 // pred_region
          _
        $region20: #{tpu_custom_call.1} parent=11 // pred_fallthru
          _
        // Predicated region
        $region21: #{tpu_custom_call.1} parent=11 // pred_check
          %p274 = pneg %p112
        $region22: #{tpu_custom_call.1} parent=11 // pred_check_branch
          %276 = sbr.rel (%p274) target = $region24
        $region23: #{tpu_custom_call.1} parent=11 // pred_region
          %s278 = ssub.s32 768, 768
          %279 = vsyncadd [#allocation6], %s278
          %s280 = sshll.u32 [#allocation7], 4
          %s281 = int_to_ptr.vmem [resolvable:$true] %s280
          %286 = dma.hbm_to_vmem [thread:$0]  %s3, 768, %s281, [#allocation6], 64, 64, 4
        $region24: #{tpu_custom_call.1} parent=11 // pred_fallthru
          _
        // Predicated region
        $region25: #{tpu_custom_call.1} parent=11 // pred_check
          %p287 = pneg %p133
        $region26: #{tpu_custom_call.1} parent=11 // pred_check_branch
          %289 = sbr.rel (%p287) target = $region28
        $region27: #{tpu_custom_call.1} parent=11 // pred_region
          _
        $region28: #{tpu_custom_call.1} parent=11 // pred_fallthru
          _
        // Predicated region
        $region29: #{tpu_custom_call.1} parent=11 // pred_check
          %p290 = pneg %p154
        $region30: #{tpu_custom_call.1} parent=11 // pred_check_branch
          %292 = sbr.rel (%p290) target = $region32
        $region31: #{tpu_custom_call.1} parent=11 // pred_region
          %s294 = ssub.s32 768, 768
          %295 = vsyncadd [#allocation9], %s294
          %s296 = sshll.u32 [#allocation8], 4
          %s297 = int_to_ptr.vmem [resolvable:$true] %s296
          %302 = dma.hbm_to_vmem [thread:$0]  %s5, 768, %s297, [#allocation9], 64, 64, 4
        $region32: #{tpu_custom_call.1} parent=11 // pred_fallthru
          _
        // Predicated region
        $region33: #{tpu_custom_call.1} parent=11 // pred_check
          %p303 = pneg %p175
        $region34: #{tpu_custom_call.1} parent=11 // pred_check_branch
          %305 = sbr.rel (%p303) target = $region36
        $region35: #{tpu_custom_call.1} parent=11 // pred_region
          _
        $region36: #{tpu_custom_call.1} parent=11 // pred_fallthru
          _
        // Predicated region
        $region37: #{tpu_custom_call.1} parent=11 // pred_check
          %p306 = pneg %p196
        $region38: #{tpu_custom_call.1} parent=11 // pred_check_branch
          %308 = sbr.rel (%p306) target = $region40
        $region39: #{tpu_custom_call.1} parent=11 // pred_region
          %s310 = ssub.s32 64, 64
          %311 = vsyncadd [#allocation9], %s310
          %s313 = sshll.u32 [#allocation10], 4
          %s314 = int_to_ptr.vmem [resolvable:$true] %s313
          %316 = dma.hbm_to_vmem [thread:$0]  %s7, 64, %s314, [#allocation9]
        $region40: #{tpu_custom_call.1} parent=11 // pred_fallthru
          _
        // Predicated region
        $region41: #{tpu_custom_call.1} parent=11 // pred_check
          %p317 = pneg %p217
        $region42: #{tpu_custom_call.1} parent=11 // pred_check_branch
          %319 = sbr.rel (%p317) target = $region44
        $region43: #{tpu_custom_call.1} parent=11 // pred_region
          _
        $region44: #{tpu_custom_call.1} parent=11 // pred_fallthru
          _
      $region12: #{tpu_custom_call.1} parent=5 // pred_fallthru
        _
      %p320 = scmp.lt.s32.totalorder %s23, 2
      // Predicated region
      $region45: #{tpu_custom_call.1} parent=5 // pred_check
        %p321 = pneg %p320
      $region46: #{tpu_custom_call.1} parent=5 // pred_check_branch
        %323 = sbr.rel (%p321) target = $region48
      $region47: #{tpu_custom_call.1} parent=5 // pred_region
        // Predicated region
        $region49: #{tpu_custom_call.1} parent=47 // pred_check
          %p324 = pneg %p43
        $region50: #{tpu_custom_call.1} parent=47 // pred_check_branch
          %326 = sbr.rel (%p324) target = $region52
        $region51: #{tpu_custom_call.1} parent=47 // pred_region
          %s327 = sand.u32 %s33, 1
          %s328 = scalar_lea.sflag [#allocation3], %s327
          %s329 = sand.u32 %s33, 1
          %s330 = smul.addr %s329, 2048
          %s331 = scalar_lea.vmem [#allocation2], %s330
          %s333 = ssub.s32 32768, 32768
          %334 = vsyncadd %s328, %s333
          %s335 = smul.addr %s23, 256
          %s336 = smul.addr %s335, 128
          %s337 = scalar_lea.hbm %s0, %s336
          %s338 = sshll.u32 %s331, 4
          %s339 = int_to_ptr.vmem [resolvable:$true] %s338
          %344 = dma.hbm_to_vmem [thread:$0]  %s337, 32768, %s339, %s328, 128, 128, 8
        $region52: #{tpu_custom_call.1} parent=47 // pred_fallthru
          _
      $region48: #{tpu_custom_call.1} parent=5 // pred_fallthru
        _
      %p345 = scmp.le.s32.totalorder 1, %s23
      %p346 = scmp.lt.s32.totalorder %s23, 3
      %p347 = pnand %p345, %p346
      %p348 = pneg %p347
      // Predicated region
      $region53: #{tpu_custom_call.1} parent=5 // pred_check
        _
      $region54: #{tpu_custom_call.1} parent=5 // pred_check_branch
        %350 = sbr.rel (%p347) target = $region56
      $region55: #{tpu_custom_call.1} parent=5 // pred_region
        %s351 = ssub.s32 %s23, 1
        %s352 = sand.u32 %s36, 1
        %s353 = scalar_lea.sflag [#allocation3], %s352
        %s354 = sand.u32 %s36, 1
        %s355 = smul.addr %s354, 2048
        %s356 = scalar_lea.vmem [#allocation2], %s355
        // Predicated region
        $region57: #{tpu_custom_call.1} parent=55 // pred_check
          %p357 = pneg %p49
        $region58: #{tpu_custom_call.1} parent=55 // pred_check_branch
          %359 = sbr.rel (%p357) target = $region60
        $region59: #{tpu_custom_call.1} parent=55 // pred_region
          %360 = dma.done %s353, 32768
        $region60: #{tpu_custom_call.1} parent=55 // pred_fallthru
          _
        // Predicated region
        $region61: #{tpu_custom_call.1} parent=55 // pred_check
          %p361 = pneg %p70
        $region62: #{tpu_custom_call.1} parent=55 // pred_check_branch
          %363 = sbr.rel (%p361) target = $region64
        $region63: #{tpu_custom_call.1} parent=55 // pred_region
          %364 = dma.done [#allocation6], 4096
        $region64: #{tpu_custom_call.1} parent=55 // pred_fallthru
          _
        // Predicated region
        $region65: #{tpu_custom_call.1} parent=55 // pred_check
          %p365 = pneg %p112
        $region66: #{tpu_custom_call.1} parent=55 // pred_check_branch
          %367 = sbr.rel (%p365) target = $region68
        $region67: #{tpu_custom_call.1} parent=55 // pred_region
          %368 = dma.done [#allocation6], 768
        $region68: #{tpu_custom_call.1} parent=55 // pred_fallthru
          _
        // Predicated region
        $region69: #{tpu_custom_call.1} parent=55 // pred_check
          %p369 = pneg %p154
        $region70: #{tpu_custom_call.1} parent=55 // pred_check_branch
          %371 = sbr.rel (%p369) target = $region72
        $region71: #{tpu_custom_call.1} parent=55 // pred_region
          %372 = dma.done [#allocation9], 768
        $region72: #{tpu_custom_call.1} parent=55 // pred_fallthru
          _
        // Predicated region
        $region73: #{tpu_custom_call.1} parent=55 // pred_check
          %p373 = pneg %p196
        $region74: #{tpu_custom_call.1} parent=55 // pred_check_branch
          %375 = sbr.rel (%p373) target = $region76
        $region75: #{tpu_custom_call.1} parent=55 // pred_region
          %376 = dma.done [#allocation9], 64
        $region76: #{tpu_custom_call.1} parent=55 // pred_fallthru
          _
        %s377 = sand.u32 %s36, 1
        %s378 = scalar_lea.sflag [#allocation3], %s377
        %s379 = sand.u32 %s36, 1
        %s380 = smul.addr %s379, 2048
        %s381 = scalar_lea.vmem [#allocation2], %s380
        %p382 = pneg %p49
        %p383 = pneg %p46
        %p384 = pneg %p70
        %p385 = pneg %p67
        %p386 = pneg %p91
        %p387 = pneg %p88
        %p388 = pneg %p112
        %p389 = pneg %p109
        %p390 = pneg %p133
        %p391 = pneg %p130
        %p392 = pneg %p154
        %p393 = pneg %p151
        %p394 = pneg %p175
        %p395 = pneg %p172
        %p396 = pneg %p196
        %p397 = pneg %p193
        %p398 = pneg %p217
        %p399 = pneg %p214
        %p400 = pneg %p243
        %p401 = pneg %p240
        %s402 = sand.u32 %s230, 1
        %s403 = scalar_lea.sflag [#allocation4], %s402
        %s404 = sand.u32 %s230, 1
        %s405 = smul.addr %s404, 8
        %s406 = scalar_lea.vmem [#allocation11], %s405
        %v408 = vld [vmem:[%s356] sm:$0xff]
        %v409 = vld [vmem:[%s356 + $0x8] sm:$0xff]
        %v410 = vld [vmem:[%s356 + $0x10] sm:$0xff]
        %v411 = vld [vmem:[%s356 + $0x18] sm:$0xff]
        %v412 = vld [vmem:[%s356 + $0x20] sm:$0xff]
        %v413 = vld [vmem:[%s356 + $0x28] sm:$0xff]
        %v414 = vld [vmem:[%s356 + $0x30] sm:$0xff]
        %v415 = vld [vmem:[%s356 + $0x38] sm:$0xff]
        %v416 = vld [vmem:[%s356 + $0x40] sm:$0xff]
        %v417 = vld [vmem:[%s356 + $0x48] sm:$0xff]
        %v418 = vld [vmem:[%s356 + $0x50] sm:$0xff]
        %v419 = vld [vmem:[%s356 + $0x58] sm:$0xff]
        %v420 = vld [vmem:[%s356 + $0x60] sm:$0xff]
        %v421 = vld [vmem:[%s356 + $0x68] sm:$0xff]
        %v422 = vld [vmem:[%s356 + $0x70] sm:$0xff]
        %v423 = vld [vmem:[%s356 + $0x78] sm:$0xff]
        %v424 = vld [vmem:[%s356 + $0x80] sm:$0xff]
        %v425 = vld [vmem:[%s356 + $0x88] sm:$0xff]
        %v426 = vld [vmem:[%s356 + $0x90] sm:$0xff]
        %v427 = vld [vmem:[%s356 + $0x98] sm:$0xff]
        %v428 = vld [vmem:[%s356 + $0xa0] sm:$0xff]
        %v429 = vld [vmem:[%s356 + $0xa8] sm:$0xff]
        %v430 = vld [vmem:[%s356 + $0xb0] sm:$0xff]
        %v431 = vld [vmem:[%s356 + $0xb8] sm:$0xff]
        %v432 = vld [vmem:[%s356 + $0xc0] sm:$0xff]
        %v433 = vld [vmem:[%s356 + $0xc8] sm:$0xff]
        %v434 = vld [vmem:[%s356 + $0xd0] sm:$0xff]
        %v435 = vld [vmem:[%s356 + $0xd8] sm:$0xff]
        %v436 = vld [vmem:[%s356 + $0xe0] sm:$0xff]
        %v437 = vld [vmem:[%s356 + $0xe8] sm:$0xff]
        %v438 = vld [vmem:[%s356 + $0xf0] sm:$0xff]
        %v439 = vld [vmem:[%s356 + $0xf8] sm:$0xff]
        %v440 = vld [vmem:[%s356 + $0x100] sm:$0xff]
        %v441 = vld [vmem:[%s356 + $0x108] sm:$0xff]
        %v442 = vld [vmem:[%s356 + $0x110] sm:$0xff]
        %v443 = vld [vmem:[%s356 + $0x118] sm:$0xff]
        %v444 = vld [vmem:[%s356 + $0x120] sm:$0xff]
        %v445 = vld [vmem:[%s356 + $0x128] sm:$0xff]
        %v446 = vld [vmem:[%s356 + $0x130] sm:$0xff]
        %v447 = vld [vmem:[%s356 + $0x138] sm:$0xff]
        %v448 = vld [vmem:[%s356 + $0x140] sm:$0xff]
        %v449 = vld [vmem:[%s356 + $0x148] sm:$0xff]
        %v450 = vld [vmem:[%s356 + $0x150] sm:$0xff]
        %v451 = vld [vmem:[%s356 + $0x158] sm:$0xff]
        %v452 = vld [vmem:[%s356 + $0x160] sm:$0xff]
        %v453 = vld [vmem:[%s356 + $0x168] sm:$0xff]
        %v454 = vld [vmem:[%s356 + $0x170] sm:$0xff]
        %v455 = vld [vmem:[%s356 + $0x178] sm:$0xff]
        %v456 = vld [vmem:[%s356 + $0x180] sm:$0xff]
        %v457 = vld [vmem:[%s356 + $0x188] sm:$0xff]
        %v458 = vld [vmem:[%s356 + $0x190] sm:$0xff]
        %v459 = vld [vmem:[%s356 + $0x198] sm:$0xff]
        %v460 = vld [vmem:[%s356 + $0x1a0] sm:$0xff]
        %v461 = vld [vmem:[%s356 + $0x1a8] sm:$0xff]
        %v462 = vld [vmem:[%s356 + $0x1b0] sm:$0xff]
        %v463 = vld [vmem:[%s356 + $0x1b8] sm:$0xff]
        %v464 = vld [vmem:[%s356 + $0x1c0] sm:$0xff]
        %v465 = vld [vmem:[%s356 + $0x1c8] sm:$0xff]
        %v466 = vld [vmem:[%s356 + $0x1d0] sm:$0xff]
        %v467 = vld [vmem:[%s356 + $0x1d8] sm:$0xff]
        %v468 = vld [vmem:[%s356 + $0x1e0] sm:$0xff]
        %v469 = vld [vmem:[%s356 + $0x1e8] sm:$0xff]
        %v470 = vld [vmem:[%s356 + $0x1f0] sm:$0xff]
        %v471 = vld [vmem:[%s356 + $0x1f8] sm:$0xff]
        %v472 = vld [vmem:[%s356 + $0x200] sm:$0xff]
        %v473 = vld [vmem:[%s356 + $0x208] sm:$0xff]
        %v474 = vld [vmem:[%s356 + $0x210] sm:$0xff]
        %v475 = vld [vmem:[%s356 + $0x218] sm:$0xff]
        %v476 = vld [vmem:[%s356 + $0x220] sm:$0xff]
        %v477 = vld [vmem:[%s356 + $0x228] sm:$0xff]
        %v478 = vld [vmem:[%s356 + $0x230] sm:$0xff]
        %v479 = vld [vmem:[%s356 + $0x238] sm:$0xff]
        %v480 = vld [vmem:[%s356 + $0x240] sm:$0xff]
        %v481 = vld [vmem:[%s356 + $0x248] sm:$0xff]
        %v482 = vld [vmem:[%s356 + $0x250] sm:$0xff]
        %v483 = vld [vmem:[%s356 + $0x258] sm:$0xff]
        %v484 = vld [vmem:[%s356 + $0x260] sm:$0xff]
        %v485 = vld [vmem:[%s356 + $0x268] sm:$0xff]
        %v486 = vld [vmem:[%s356 + $0x270] sm:$0xff]
        %v487 = vld [vmem:[%s356 + $0x278] sm:$0xff]
        %v488 = vld [vmem:[%s356 + $0x280] sm:$0xff]
        %v489 = vld [vmem:[%s356 + $0x288] sm:$0xff]
        %v490 = vld [vmem:[%s356 + $0x290] sm:$0xff]
        %v491 = vld [vmem:[%s356 + $0x298] sm:$0xff]
        %v492 = vld [vmem:[%s356 + $0x2a0] sm:$0xff]
        %v493 = vld [vmem:[%s356 + $0x2a8] sm:$0xff]
        %v494 = vld [vmem:[%s356 + $0x2b0] sm:$0xff]
        %v495 = vld [vmem:[%s356 + $0x2b8] sm:$0xff]
        %v496 = vld [vmem:[%s356 + $0x2c0] sm:$0xff]
        %v497 = vld [vmem:[%s356 + $0x2c8] sm:$0xff]
        %v498 = vld [vmem:[%s356 + $0x2d0] sm:$0xff]
        %v499 = vld [vmem:[%s356 + $0x2d8] sm:$0xff]
        %v500 = vld [vmem:[%s356 + $0x2e0] sm:$0xff]
        %v501 = vld [vmem:[%s356 + $0x2e8] sm:$0xff]
        %v502 = vld [vmem:[%s356 + $0x2f0] sm:$0xff]
        %v503 = vld [vmem:[%s356 + $0x2f8] sm:$0xff]
        %v504 = vld [vmem:[%s356 + $0x300] sm:$0xff]
        %v505 = vld [vmem:[%s356 + $0x308] sm:$0xff]
        %v506 = vld [vmem:[%s356 + $0x310] sm:$0xff]
        %v507 = vld [vmem:[%s356 + $0x318] sm:$0xff]
        %v508 = vld [vmem:[%s356 + $0x320] sm:$0xff]
        %v509 = vld [vmem:[%s356 + $0x328] sm:$0xff]
        %v510 = vld [vmem:[%s356 + $0x330] sm:$0xff]
        %v511 = vld [vmem:[%s356 + $0x338] sm:$0xff]
        %v512 = vld [vmem:[%s356 + $0x340] sm:$0xff]
        %v513 = vld [vmem:[%s356 + $0x348] sm:$0xff]
        %v514 = vld [vmem:[%s356 + $0x350] sm:$0xff]
        %v515 = vld [vmem:[%s356 + $0x358] sm:$0xff]
        %v516 = vld [vmem:[%s356 + $0x360] sm:$0xff]
        %v517 = vld [vmem:[%s356 + $0x368] sm:$0xff]
        %v518 = vld [vmem:[%s356 + $0x370] sm:$0xff]
        %v519 = vld [vmem:[%s356 + $0x378] sm:$0xff]
        %v520 = vld [vmem:[%s356 + $0x380] sm:$0xff]
        %v521 = vld [vmem:[%s356 + $0x388] sm:$0xff]
        %v522 = vld [vmem:[%s356 + $0x390] sm:$0xff]
        %v523 = vld [vmem:[%s356 + $0x398] sm:$0xff]
        %v524 = vld [vmem:[%s356 + $0x3a0] sm:$0xff]
        %v525 = vld [vmem:[%s356 + $0x3a8] sm:$0xff]
        %v526 = vld [vmem:[%s356 + $0x3b0] sm:$0xff]
        %v527 = vld [vmem:[%s356 + $0x3b8] sm:$0xff]
        %v528 = vld [vmem:[%s356 + $0x3c0] sm:$0xff]
        %v529 = vld [vmem:[%s356 + $0x3c8] sm:$0xff]
        %v530 = vld [vmem:[%s356 + $0x3d0] sm:$0xff]
        %v531 = vld [vmem:[%s356 + $0x3d8] sm:$0xff]
        %v532 = vld [vmem:[%s356 + $0x3e0] sm:$0xff]
        %v533 = vld [vmem:[%s356 + $0x3e8] sm:$0xff]
        %v534 = vld [vmem:[%s356 + $0x3f0] sm:$0xff]
        %v535 = vld [vmem:[%s356 + $0x3f8] sm:$0xff]
        %v536 = vld [vmem:[%s356 + $0x400] sm:$0xff]
        %v537 = vld [vmem:[%s356 + $0x408] sm:$0xff]
        %v538 = vld [vmem:[%s356 + $0x410] sm:$0xff]
        %v539 = vld [vmem:[%s356 + $0x418] sm:$0xff]
        %v540 = vld [vmem:[%s356 + $0x420] sm:$0xff]
        %v541 = vld [vmem:[%s356 + $0x428] sm:$0xff]
        %v542 = vld [vmem:[%s356 + $0x430] sm:$0xff]
        %v543 = vld [vmem:[%s356 + $0x438] sm:$0xff]
        %v544 = vld [vmem:[%s356 + $0x440] sm:$0xff]
        %v545 = vld [vmem:[%s356 + $0x448] sm:$0xff]
        %v546 = vld [vmem:[%s356 + $0x450] sm:$0xff]
        %v547 = vld [vmem:[%s356 + $0x458] sm:$0xff]
        %v548 = vld [vmem:[%s356 + $0x460] sm:$0xff]
        %v549 = vld [vmem:[%s356 + $0x468] sm:$0xff]
        %v550 = vld [vmem:[%s356 + $0x470] sm:$0xff]
        %v551 = vld [vmem:[%s356 + $0x478] sm:$0xff]
        %v552 = vld [vmem:[%s356 + $0x480] sm:$0xff]
        %v553 = vld [vmem:[%s356 + $0x488] sm:$0xff]
        %v554 = vld [vmem:[%s356 + $0x490] sm:$0xff]
        %v555 = vld [vmem:[%s356 + $0x498] sm:$0xff]
        %v556 = vld [vmem:[%s356 + $0x4a0] sm:$0xff]
        %v557 = vld [vmem:[%s356 + $0x4a8] sm:$0xff]
        %v558 = vld [vmem:[%s356 + $0x4b0] sm:$0xff]
        %v559 = vld [vmem:[%s356 + $0x4b8] sm:$0xff]
        %v560 = vld [vmem:[%s356 + $0x4c0] sm:$0xff]
        %v561 = vld [vmem:[%s356 + $0x4c8] sm:$0xff]
        %v562 = vld [vmem:[%s356 + $0x4d0] sm:$0xff]
        %v563 = vld [vmem:[%s356 + $0x4d8] sm:$0xff]
        %v564 = vld [vmem:[%s356 + $0x4e0] sm:$0xff]
        %v565 = vld [vmem:[%s356 + $0x4e8] sm:$0xff]
        %v566 = vld [vmem:[%s356 + $0x4f0] sm:$0xff]
        %v567 = vld [vmem:[%s356 + $0x4f8] sm:$0xff]
        %v568 = vld [vmem:[%s356 + $0x500] sm:$0xff]
        %v569 = vld [vmem:[%s356 + $0x508] sm:$0xff]
        %v570 = vld [vmem:[%s356 + $0x510] sm:$0xff]
        %v571 = vld [vmem:[%s356 + $0x518] sm:$0xff]
        %v572 = vld [vmem:[%s356 + $0x520] sm:$0xff]
        %v573 = vld [vmem:[%s356 + $0x528] sm:$0xff]
        %v574 = vld [vmem:[%s356 + $0x530] sm:$0xff]
        %v575 = vld [vmem:[%s356 + $0x538] sm:$0xff]
        %v576 = vld [vmem:[%s356 + $0x540] sm:$0xff]
        %v577 = vld [vmem:[%s356 + $0x548] sm:$0xff]
        %v578 = vld [vmem:[%s356 + $0x550] sm:$0xff]
        %v579 = vld [vmem:[%s356 + $0x558] sm:$0xff]
        %v580 = vld [vmem:[%s356 + $0x560] sm:$0xff]
        %v581 = vld [vmem:[%s356 + $0x568] sm:$0xff]
        %v582 = vld [vmem:[%s356 + $0x570] sm:$0xff]
        %v583 = vld [vmem:[%s356 + $0x578] sm:$0xff]
        %v584 = vld [vmem:[%s356 + $0x580] sm:$0xff]
        %v585 = vld [vmem:[%s356 + $0x588] sm:$0xff]
        %v586 = vld [vmem:[%s356 + $0x590] sm:$0xff]
        %v587 = vld [vmem:[%s356 + $0x598] sm:$0xff]
        %v588 = vld [vmem:[%s356 + $0x5a0] sm:$0xff]
        %v589 = vld [vmem:[%s356 + $0x5a8] sm:$0xff]
        %v590 = vld [vmem:[%s356 + $0x5b0] sm:$0xff]
        %v591 = vld [vmem:[%s356 + $0x5b8] sm:$0xff]
        %v592 = vld [vmem:[%s356 + $0x5c0] sm:$0xff]
        %v593 = vld [vmem:[%s356 + $0x5c8] sm:$0xff]
        %v594 = vld [vmem:[%s356 + $0x5d0] sm:$0xff]
        %v595 = vld [vmem:[%s356 + $0x5d8] sm:$0xff]
        %v596 = vld [vmem:[%s356 + $0x5e0] sm:$0xff]
        %v597 = vld [vmem:[%s356 + $0x5e8] sm:$0xff]
        %v598 = vld [vmem:[%s356 + $0x5f0] sm:$0xff]
        %v599 = vld [vmem:[%s356 + $0x5f8] sm:$0xff]
        %v600 = vld [vmem:[%s356 + $0x600] sm:$0xff]
        %v601 = vld [vmem:[%s356 + $0x608] sm:$0xff]
        %v602 = vld [vmem:[%s356 + $0x610] sm:$0xff]
        %v603 = vld [vmem:[%s356 + $0x618] sm:$0xff]
        %v604 = vld [vmem:[%s356 + $0x620] sm:$0xff]
        %v605 = vld [vmem:[%s356 + $0x628] sm:$0xff]
        %v606 = vld [vmem:[%s356 + $0x630] sm:$0xff]
        %v607 = vld [vmem:[%s356 + $0x638] sm:$0xff]
        %v608 = vld [vmem:[%s356 + $0x640] sm:$0xff]
        %v609 = vld [vmem:[%s356 + $0x648] sm:$0xff]
        %v610 = vld [vmem:[%s356 + $0x650] sm:$0xff]
        %v611 = vld [vmem:[%s356 + $0x658] sm:$0xff]
        %v612 = vld [vmem:[%s356 + $0x660] sm:$0xff]
        %v613 = vld [vmem:[%s356 + $0x668] sm:$0xff]
        %v614 = vld [vmem:[%s356 + $0x670] sm:$0xff]
        %v615 = vld [vmem:[%s356 + $0x678] sm:$0xff]
        %v616 = vld [vmem:[%s356 + $0x680] sm:$0xff]
        %v617 = vld [vmem:[%s356 + $0x688] sm:$0xff]
        %v618 = vld [vmem:[%s356 + $0x690] sm:$0xff]
        %v619 = vld [vmem:[%s356 + $0x698] sm:$0xff]
        %v620 = vld [vmem:[%s356 + $0x6a0] sm:$0xff]
        %v621 = vld [vmem:[%s356 + $0x6a8] sm:$0xff]
        %v622 = vld [vmem:[%s356 + $0x6b0] sm:$0xff]
        %v623 = vld [vmem:[%s356 + $0x6b8] sm:$0xff]
        %v624 = vld [vmem:[%s356 + $0x6c0] sm:$0xff]
        %v625 = vld [vmem:[%s356 + $0x6c8] sm:$0xff]
        %v626 = vld [vmem:[%s356 + $0x6d0] sm:$0xff]
        %v627 = vld [vmem:[%s356 + $0x6d8] sm:$0xff]
        %v628 = vld [vmem:[%s356 + $0x6e0] sm:$0xff]
        %v629 = vld [vmem:[%s356 + $0x6e8] sm:$0xff]
        %v630 = vld [vmem:[%s356 + $0x6f0] sm:$0xff]
        %v631 = vld [vmem:[%s356 + $0x6f8] sm:$0xff]
        %v632 = vld [vmem:[%s356 + $0x700] sm:$0xff]
        %v633 = vld [vmem:[%s356 + $0x708] sm:$0xff]
        %v634 = vld [vmem:[%s356 + $0x710] sm:$0xff]
        %v635 = vld [vmem:[%s356 + $0x718] sm:$0xff]
        %v636 = vld [vmem:[%s356 + $0x720] sm:$0xff]
        %v637 = vld [vmem:[%s356 + $0x728] sm:$0xff]
        %v638 = vld [vmem:[%s356 + $0x730] sm:$0xff]
        %v639 = vld [vmem:[%s356 + $0x738] sm:$0xff]
        %v640 = vld [vmem:[%s356 + $0x740] sm:$0xff]
        %v641 = vld [vmem:[%s356 + $0x748] sm:$0xff]
        %v642 = vld [vmem:[%s356 + $0x750] sm:$0xff]
        %v643 = vld [vmem:[%s356 + $0x758] sm:$0xff]
        %v644 = vld [vmem:[%s356 + $0x760] sm:$0xff]
        %v645 = vld [vmem:[%s356 + $0x768] sm:$0xff]
        %v646 = vld [vmem:[%s356 + $0x770] sm:$0xff]
        %v647 = vld [vmem:[%s356 + $0x778] sm:$0xff]
        %v648 = vld [vmem:[%s356 + $0x780] sm:$0xff]
        %v649 = vld [vmem:[%s356 + $0x788] sm:$0xff]
        %v650 = vld [vmem:[%s356 + $0x790] sm:$0xff]
        %v651 = vld [vmem:[%s356 + $0x798] sm:$0xff]
        %v652 = vld [vmem:[%s356 + $0x7a0] sm:$0xff]
        %v653 = vld [vmem:[%s356 + $0x7a8] sm:$0xff]
        %v654 = vld [vmem:[%s356 + $0x7b0] sm:$0xff]
        %v655 = vld [vmem:[%s356 + $0x7b8] sm:$0xff]
        %v656 = vld [vmem:[%s356 + $0x7c0] sm:$0xff]
        %v657 = vld [vmem:[%s356 + $0x7c8] sm:$0xff]
        %v658 = vld [vmem:[%s356 + $0x7d0] sm:$0xff]
        %v659 = vld [vmem:[%s356 + $0x7d8] sm:$0xff]
        %v660 = vld [vmem:[%s356 + $0x7e0] sm:$0xff]
        %v661 = vld [vmem:[%s356 + $0x7e8] sm:$0xff]
        %v662 = vld [vmem:[%s356 + $0x7f0] sm:$0xff]
        %v663 = vld [vmem:[%s356 + $0x7f8] sm:$0xff]
        %v664 = vpack.c.bf16 %v409, %v408
        %v665 = vpack.c.bf16 %v411, %v410
        %v666 = vpack.c.bf16 %v413, %v412
        %v667 = vpack.c.bf16 %v415, %v414
        %v668 = vpack.c.bf16 %v417, %v416
        %v669 = vpack.c.bf16 %v419, %v418
        %v670 = vpack.c.bf16 %v421, %v420
        %v671 = vpack.c.bf16 %v423, %v422
        %v672 = vpack.c.bf16 %v425, %v424
        %v673 = vpack.c.bf16 %v427, %v426
        %v674 = vpack.c.bf16 %v429, %v428
        %v675 = vpack.c.bf16 %v431, %v430
        %v676 = vpack.c.bf16 %v433, %v432
        %v677 = vpack.c.bf16 %v435, %v434
        %v678 = vpack.c.bf16 %v437, %v436
        %v679 = vpack.c.bf16 %v439, %v438
        %v680 = vpack.c.bf16 %v441, %v440
        %v681 = vpack.c.bf16 %v443, %v442
        %v682 = vpack.c.bf16 %v445, %v444
        %v683 = vpack.c.bf16 %v447, %v446
        %v684 = vpack.c.bf16 %v449, %v448
        %v685 = vpack.c.bf16 %v451, %v450
        %v686 = vpack.c.bf16 %v453, %v452
        %v687 = vpack.c.bf16 %v455, %v454
        %v688 = vpack.c.bf16 %v457, %v456
        %v689 = vpack.c.bf16 %v459, %v458
        %v690 = vpack.c.bf16 %v461, %v460
        %v691 = vpack.c.bf16 %v463, %v462
        %v692 = vpack.c.bf16 %v465, %v464
        %v693 = vpack.c.bf16 %v467, %v466
        %v694 = vpack.c.bf16 %v469, %v468
        %v695 = vpack.c.bf16 %v471, %v470
        %v696 = vpack.c.bf16 %v473, %v472
        %v697 = vpack.c.bf16 %v475, %v474
        %v698 = vpack.c.bf16 %v477, %v476
        %v699 = vpack.c.bf16 %v479, %v478
        %v700 = vpack.c.bf16 %v481, %v480
        %v701 = vpack.c.bf16 %v483, %v482
        %v702 = vpack.c.bf16 %v485, %v484
        %v703 = vpack.c.bf16 %v487, %v486
        %v704 = vpack.c.bf16 %v489, %v488
        %v705 = vpack.c.bf16 %v491, %v490
        %v706 = vpack.c.bf16 %v493, %v492
        %v707 = vpack.c.bf16 %v495, %v494
        %v708 = vpack.c.bf16 %v497, %v496
        %v709 = vpack.c.bf16 %v499, %v498
        %v710 = vpack.c.bf16 %v501, %v500
        %v711 = vpack.c.bf16 %v503, %v502
        %v712 = vpack.c.bf16 %v505, %v504
        %v713 = vpack.c.bf16 %v507, %v506
        %v714 = vpack.c.bf16 %v509, %v508
        %v715 = vpack.c.bf16 %v511, %v510
        %v716 = vpack.c.bf16 %v513, %v512
        %v717 = vpack.c.bf16 %v515, %v514
        %v718 = vpack.c.bf16 %v517, %v516
        %v719 = vpack.c.bf16 %v519, %v518
        %v720 = vpack.c.bf16 %v521, %v520
        %v721 = vpack.c.bf16 %v523, %v522
        %v722 = vpack.c.bf16 %v525, %v524
        %v723 = vpack.c.bf16 %v527, %v526
        %v724 = vpack.c.bf16 %v529, %v528
        %v725 = vpack.c.bf16 %v531, %v530
        %v726 = vpack.c.bf16 %v533, %v532
        %v727 = vpack.c.bf16 %v535, %v534
        %v728 = vpack.c.bf16 %v537, %v536
        %v729 = vpack.c.bf16 %v539, %v538
        %v730 = vpack.c.bf16 %v541, %v540
        %v731 = vpack.c.bf16 %v543, %v542
        %v732 = vpack.c.bf16 %v545, %v544
        %v733 = vpack.c.bf16 %v547, %v546
        %v734 = vpack.c.bf16 %v549, %v548
        %v735 = vpack.c.bf16 %v551, %v550
        %v736 = vpack.c.bf16 %v553, %v552
        %v737 = vpack.c.bf16 %v555, %v554
        %v738 = vpack.c.bf16 %v557, %v556
        %v739 = vpack.c.bf16 %v559, %v558
        %v740 = vpack.c.bf16 %v561, %v560
        %v741 = vpack.c.bf16 %v563, %v562
        %v742 = vpack.c.bf16 %v565, %v564
        %v743 = vpack.c.bf16 %v567, %v566
        %v744 = vpack.c.bf16 %v569, %v568
        %v745 = vpack.c.bf16 %v571, %v570
        %v746 = vpack.c.bf16 %v573, %v572
        %v747 = vpack.c.bf16 %v575, %v574
        %v748 = vpack.c.bf16 %v577, %v576
        %v749 = vpack.c.bf16 %v579, %v578
        %v750 = vpack.c.bf16 %v581, %v580
        %v751 = vpack.c.bf16 %v583, %v582
        %v752 = vpack.c.bf16 %v585, %v584
        %v753 = vpack.c.bf16 %v587, %v586
        %v754 = vpack.c.bf16 %v589, %v588
        %v755 = vpack.c.bf16 %v591, %v590
        %v756 = vpack.c.bf16 %v593, %v592
        %v757 = vpack.c.bf16 %v595, %v594
        %v758 = vpack.c.bf16 %v597, %v596
        %v759 = vpack.c.bf16 %v599, %v598
        %v760 = vpack.c.bf16 %v601, %v600
        %v761 = vpack.c.bf16 %v603, %v602
        %v762 = vpack.c.bf16 %v605, %v604
        %v763 = vpack.c.bf16 %v607, %v606
        %v764 = vpack.c.bf16 %v609, %v608
        %v765 = vpack.c.bf16 %v611, %v610
        %v766 = vpack.c.bf16 %v613, %v612
        %v767 = vpack.c.bf16 %v615, %v614
        %v768 = vpack.c.bf16 %v617, %v616
        %v769 = vpack.c.bf16 %v619, %v618
        %v770 = vpack.c.bf16 %v621, %v620
        %v771 = vpack.c.bf16 %v623, %v622
        %v772 = vpack.c.bf16 %v625, %v624
        %v773 = vpack.c.bf16 %v627, %v626
        %v774 = vpack.c.bf16 %v629, %v628
        %v775 = vpack.c.bf16 %v631, %v630
        %v776 = vpack.c.bf16 %v633, %v632
        %v777 = vpack.c.bf16 %v635, %v634
        %v778 = vpack.c.bf16 %v637, %v636
        %v779 = vpack.c.bf16 %v639, %v638
        %v780 = vpack.c.bf16 %v641, %v640
        %v781 = vpack.c.bf16 %v643, %v642
        %v782 = vpack.c.bf16 %v645, %v644
        %v783 = vpack.c.bf16 %v647, %v646
        %v784 = vpack.c.bf16 %v649, %v648
        %v785 = vpack.c.bf16 %v651, %v650
        %v786 = vpack.c.bf16 %v653, %v652
        %v787 = vpack.c.bf16 %v655, %v654
        %v788 = vpack.c.bf16 %v657, %v656
        %v789 = vpack.c.bf16 %v659, %v658
        %v790 = vpack.c.bf16 %v661, %v660
        %v791 = vpack.c.bf16 %v663, %v662
        %v792 = vld [vmem:[#allocation5] sm:$0xff]
        %v793 = vld [vmem:[#allocation5 + $0x8] sm:$0xff]
        %v794 = vld [vmem:[#allocation5 + $0x10] sm:$0xff]
        %v795 = vld [vmem:[#allocation5 + $0x18] sm:$0xff]
        %v796 = vld [vmem:[#allocation5 + $0x20] sm:$0xff]
        %v797 = vld [vmem:[#allocation5 + $0x28] sm:$0xff]
        %v798 = vld [vmem:[#allocation5 + $0x30] sm:$0xff]
        %v799 = vld [vmem:[#allocation5 + $0x38] sm:$0xff]
        %v800 = vld [vmem:[#allocation5 + $0x40] sm:$0xff]
        %v801 = vld [vmem:[#allocation5 + $0x48] sm:$0xff]
        %v802 = vld [vmem:[#allocation5 + $0x50] sm:$0xff]
        %v803 = vld [vmem:[#allocation5 + $0x58] sm:$0xff]
        %v804 = vld [vmem:[#allocation5 + $0x60] sm:$0xff]
        %v805 = vld [vmem:[#allocation5 + $0x68] sm:$0xff]
        %v806 = vld [vmem:[#allocation5 + $0x70] sm:$0xff]
        %v807 = vld [vmem:[#allocation5 + $0x78] sm:$0xff]
        %v808 = vld [vmem:[#allocation5 + $0x80] sm:$0xff]
        %v809 = vld [vmem:[#allocation5 + $0x88] sm:$0xff]
        %v810 = vld [vmem:[#allocation5 + $0x90] sm:$0xff]
        %v811 = vld [vmem:[#allocation5 + $0x98] sm:$0xff]
        %v812 = vld [vmem:[#allocation5 + $0xa0] sm:$0xff]
        %v813 = vld [vmem:[#allocation5 + $0xa8] sm:$0xff]
        %v814 = vld [vmem:[#allocation5 + $0xb0] sm:$0xff]
        %v815 = vld [vmem:[#allocation5 + $0xb8] sm:$0xff]
        %v816 = vld [vmem:[#allocation5 + $0xc0] sm:$0xff]
        %v817 = vld [vmem:[#allocation5 + $0xc8] sm:$0xff]
        %v818 = vld [vmem:[#allocation5 + $0xd0] sm:$0xff]
        %v819 = vld [vmem:[#allocation5 + $0xd8] sm:$0xff]
        %v820 = vld [vmem:[#allocation5 + $0xe0] sm:$0xff]
        %v821 = vld [vmem:[#allocation5 + $0xe8] sm:$0xff]
        %v822 = vld [vmem:[#allocation5 + $0xf0] sm:$0xff]
        %v823 = vld [vmem:[#allocation5 + $0xf8] sm:$0xff]
        %v824 = vld [vmem:[%s2] sm:$0xff]
        %v825 = vld [vmem:[%s2 + $0x8] sm:$0xff]
        %v826 = vld [vmem:[%s2 + $0x10] sm:$0xff]
        %v827 = vld [vmem:[%s2 + $0x18] sm:$0xff]
        %829 = vset.pattern.permute.xlu0 0
        %830 = vperm.xlu0 %829, %v824
        %v831 = vpop.permute.xlu0 %830
        %834 = vset.pattern.permute.xlu0 0
        %835 = vperm.xlu0 %834, %v825
        %v836 = vpop.permute.xlu0 %835
        %839 = vset.pattern.permute.xlu0 0
        %840 = vperm.xlu0 %839, %v826
        %v841 = vpop.permute.xlu0 %840
        %844 = vset.pattern.permute.xlu0 0
        %845 = vperm.xlu0 %844, %v827
        %v846 = vpop.permute.xlu0 %845
        %v880 = vunpack.c.l.b16 %v792
        %v881 = vunpack.c.h.b16 %v792
        %v882 = vunpack.c.l.b16 %v793
        %v883 = vunpack.c.h.b16 %v793
        %v884 = vunpack.c.l.b16 %v794
        %v885 = vunpack.c.h.b16 %v794
        %v886 = vunpack.c.l.b16 %v795
        %v887 = vunpack.c.h.b16 %v795
        %v888 = vunpack.c.l.b16 %v796
        %v889 = vunpack.c.h.b16 %v796
        %v890 = vunpack.c.l.b16 %v797
        %v891 = vunpack.c.h.b16 %v797
        %v892 = vunpack.c.l.b16 %v798
        %v893 = vunpack.c.h.b16 %v798
        %v894 = vunpack.c.l.b16 %v799
        %v895 = vunpack.c.h.b16 %v799
        %v896 = vunpack.c.l.b16 %v800
        %v897 = vunpack.c.h.b16 %v800
        %v898 = vunpack.c.l.b16 %v801
        %v899 = vunpack.c.h.b16 %v801
        %v900 = vunpack.c.l.b16 %v802
        %v901 = vunpack.c.h.b16 %v802
        %v902 = vunpack.c.l.b16 %v803
        %v903 = vunpack.c.h.b16 %v803
        %v904 = vunpack.c.l.b16 %v804
        %v905 = vunpack.c.h.b16 %v804
        %v906 = vunpack.c.l.b16 %v805
        %v907 = vunpack.c.h.b16 %v805
        %v908 = vunpack.c.l.b16 %v806
        %v909 = vunpack.c.h.b16 %v806
        %v910 = vunpack.c.l.b16 %v807
        %v911 = vunpack.c.h.b16 %v807
        %v912 = vunpack.c.l.b16 %v808
        %v913 = vunpack.c.h.b16 %v808
        %v914 = vunpack.c.l.b16 %v809
        %v915 = vunpack.c.h.b16 %v809
        %v916 = vunpack.c.l.b16 %v810
        %v917 = vunpack.c.h.b16 %v810
        %v918 = vunpack.c.l.b16 %v811
        %v919 = vunpack.c.h.b16 %v811
        %v920 = vunpack.c.l.b16 %v812
        %v921 = vunpack.c.h.b16 %v812
        %v922 = vunpack.c.l.b16 %v813
        %v923 = vunpack.c.h.b16 %v813
        %v924 = vunpack.c.l.b16 %v814
        %v925 = vunpack.c.h.b16 %v814
        %v926 = vunpack.c.l.b16 %v815
        %v927 = vunpack.c.h.b16 %v815
        %v928 = vunpack.c.l.b16 %v816
        %v929 = vunpack.c.h.b16 %v816
        %v930 = vunpack.c.l.b16 %v817
        %v931 = vunpack.c.h.b16 %v817
        %v932 = vunpack.c.l.b16 %v818
        %v933 = vunpack.c.h.b16 %v818
        %v934 = vunpack.c.l.b16 %v819
        %v935 = vunpack.c.h.b16 %v819
        %v936 = vunpack.c.l.b16 %v820
        %v937 = vunpack.c.h.b16 %v820
        %v938 = vunpack.c.l.b16 %v821
        %v939 = vunpack.c.h.b16 %v821
        %v940 = vunpack.c.l.b16 %v822
        %v941 = vunpack.c.h.b16 %v822
        %v942 = vunpack.c.l.b16 %v823
        %v943 = vunpack.c.h.b16 %v823
        %v944 = vpack.c.b16 %v896, %v880
        %v945 = vpack.c.b16 %v897, %v881
        %v946 = vpack.c.b16 %v898, %v882
        %v947 = vpack.c.b16 %v899, %v883
        %v948 = vpack.c.b16 %v900, %v884
        %v949 = vpack.c.b16 %v901, %v885
        %v950 = vpack.c.b16 %v902, %v886
        %v951 = vpack.c.b16 %v903, %v887
        %v952 = vpack.c.b16 %v904, %v888
        %v953 = vpack.c.b16 %v905, %v889
        %v954 = vpack.c.b16 %v906, %v890
        %v955 = vpack.c.b16 %v907, %v891
        %v956 = vpack.c.b16 %v908, %v892
        %v957 = vpack.c.b16 %v909, %v893
        %v958 = vpack.c.b16 %v910, %v894
        %v959 = vpack.c.b16 %v911, %v895
        %v960 = vpack.c.b16 %v928, %v912
        %v961 = vpack.c.b16 %v929, %v913
        %v962 = vpack.c.b16 %v930, %v914
        %v963 = vpack.c.b16 %v931, %v915
        %v964 = vpack.c.b16 %v932, %v916
        %v965 = vpack.c.b16 %v933, %v917
        %v966 = vpack.c.b16 %v934, %v918
        %v967 = vpack.c.b16 %v935, %v919
        %v968 = vpack.c.b16 %v936, %v920
        %v969 = vpack.c.b16 %v937, %v921
        %v970 = vpack.c.b16 %v938, %v922
        %v971 = vpack.c.b16 %v939, %v923
        %v972 = vpack.c.b16 %v940, %v924
        %v973 = vpack.c.b16 %v941, %v925
        %v974 = vpack.c.b16 %v942, %v926
        %v975 = vpack.c.b16 %v943, %v927
        %1008 = vmatprep.subr.bf16.mxu0 0
        %1009 = vmatpush1.bf16.msra.mxu0 %v664
        %1010 = vmatprep.subr.bf16.mxu0 0
        %1011 = vmatpush1.bf16.msra.mxu0 %v665
        %1012 = vmatprep.subr.bf16.mxu0 0
        %1013 = vmatpush1.bf16.msra.mxu0 %v666
        %1014 = vmatprep.subr.bf16.mxu0 0
        %1015 = vmatpush1.bf16.msra.mxu0 %v667
        %1016 = vmatprep.subr.bf16.mxu0 0
        %1017 = vmatpush1.bf16.msra.mxu0 %v668
        %1018 = vmatprep.subr.bf16.mxu0 0
        %1019 = vmatpush1.bf16.msra.mxu0 %v669
        %1020 = vmatprep.subr.bf16.mxu0 0
        %1021 = vmatpush1.bf16.msra.mxu0 %v670
        %1022 = vmatprep.subr.bf16.mxu0 0
        %1023 = vmatpush1.bf16.msra.mxu0 %v671
        %1024 = vmatprep.subr.bf16.mxu0 0
        %1025 = vmatpush1.bf16.msra.mxu0 %v672
        %1026 = vmatprep.subr.bf16.mxu0 0
        %1027 = vmatpush1.bf16.msra.mxu0 %v673
        %1028 = vmatprep.subr.bf16.mxu0 0
        %1029 = vmatpush1.bf16.msra.mxu0 %v674
        %1030 = vmatprep.subr.bf16.mxu0 0
        %1031 = vmatpush1.bf16.msra.mxu0 %v675
        %1032 = vmatprep.subr.bf16.mxu0 0
        %1033 = vmatpush1.bf16.msra.mxu0 %v676
        %1034 = vmatprep.subr.bf16.mxu0 0
        %1035 = vmatpush1.bf16.msra.mxu0 %v677
        %1036 = vmatprep.subr.bf16.mxu0 0
        %1037 = vmatpush1.bf16.msra.mxu0 %v678
        %1038 = vmatprep.subr.bf16.mxu0 0
        %1039 = vmatpush1.bf16.msra.mxu0 %v679
        %1040 = vmatprep.mubr.bf16.mxu0 %v945
        %1041 = vmatmul.mubr.bf16.gmra.mrb[0].mxu0 %v944
        %v1042 = vpop.f32.mrb[0].mxu0
        %v1043 = vadd.f32 %v831, %v1042
        %v1044 = vpop.f32.mrb[0].mxu0
        %v1045 = vpop.f32.mrb[0].mxu0
        %v1046 = vadd.f32 %v836, %v1045
        %v1047 = vpop.f32.mrb[0].mxu0
        %1048 = vmatprep.mubr.bf16.mxu0 %v961
        %1049 = vmatmul.mubr.bf16.gmra.mrb[0].mxu0 %v960
        %v1050 = vpop.f32.mrb[0].mxu0
        %v1051 = vadd.f32 %v841, %v1050
        %v1052 = vpop.f32.mrb[0].mxu0
        %v1053 = vpop.f32.mrb[0].mxu0
        %v1054 = vadd.f32 %v846, %v1053
        %v1055 = vpop.f32.mrb[0].mxu0
        %1056 = vdwg.mxu0
        %1057 = vmatprep.subr.bf16.mxu0 0
        %1058 = vmatpush1.bf16.msra.mxu0 %v680
        %1059 = vmatprep.subr.bf16.mxu0 0
        %1060 = vmatpush1.bf16.msra.mxu0 %v681
        %1061 = vmatprep.subr.bf16.mxu0 0
        %1062 = vmatpush1.bf16.msra.mxu0 %v682
        %1063 = vmatprep.subr.bf16.mxu0 0
        %1064 = vmatpush1.bf16.msra.mxu0 %v683
        %1065 = vmatprep.subr.bf16.mxu0 0
        %1066 = vmatpush1.bf16.msra.mxu0 %v684
        %1067 = vmatprep.subr.bf16.mxu0 0
        %1068 = vmatpush1.bf16.msra.mxu0 %v685
        %1069 = vmatprep.subr.bf16.mxu0 0
        %1070 = vmatpush1.bf16.msra.mxu0 %v686
        %1071 = vmatprep.subr.bf16.mxu0 0
        %1072 = vmatpush1.bf16.msra.mxu0 %v687
        %1073 = vmatprep.subr.bf16.mxu0 0
        %1074 = vmatpush1.bf16.msra.mxu0 %v688
        %1075 = vmatprep.subr.bf16.mxu0 0
        %1076 = vmatpush1.bf16.msra.mxu0 %v689
        %1077 = vmatprep.subr.bf16.mxu0 0
        %1078 = vmatpush1.bf16.msra.mxu0 %v690
        %1079 = vmatprep.subr.bf16.mxu0 0
        %1080 = vmatpush1.bf16.msra.mxu0 %v691
        %1081 = vmatprep.subr.bf16.mxu0 0
        %1082 = vmatpush1.bf16.msra.mxu0 %v692
        %1083 = vmatprep.subr.bf16.mxu0 0
        %1084 = vmatpush1.bf16.msra.mxu0 %v693
        %1085 = vmatprep.subr.bf16.mxu0 0
        %1086 = vmatpush1.bf16.msra.mxu0 %v694
        %1087 = vmatprep.subr.bf16.mxu0 0
        %1088 = vmatpush1.bf16.msra.mxu0 %v695
        %1089 = vmatprep.mubr.bf16.mxu0 %v947
        %1090 = vmatmul.mubr.bf16.gmra.mrb[0].mxu0 %v946
        %v1091 = vpop.f32.mrb[0].mxu0
        %v1092 = vadd.f32 %v1043, %v1091
        %v1093 = vpop.f32.mrb[0].mxu0
        %v1094 = vpop.f32.mrb[0].mxu0
        %v1095 = vadd.f32 %v1046, %v1094
        %v1096 = vpop.f32.mrb[0].mxu0
        %1097 = vmatprep.mubr.bf16.mxu0 %v963
        %1098 = vmatmul.mubr.bf16.gmra.mrb[0].mxu0 %v962
        %v1099 = vpop.f32.mrb[0].mxu0
        %v1100 = vadd.f32 %v1051, %v1099
        %v1101 = vpop.f32.mrb[0].mxu0
        %v1102 = vpop.f32.mrb[0].mxu0
        %v1103 = vadd.f32 %v1054, %v1102
        %v1104 = vpop.f32.mrb[0].mxu0
        %1105 = vdwg.mxu0
        %1106 = vmatprep.subr.bf16.mxu0 0
        %1107 = vmatpush1.bf16.msra.mxu0 %v696
        %1108 = vmatprep.subr.bf16.mxu0 0
        %1109 = vmatpush1.bf16.msra.mxu0 %v697
        %1110 = vmatprep.subr.bf16.mxu0 0
        %1111 = vmatpush1.bf16.msra.mxu0 %v698
        %1112 = vmatprep.subr.bf16.mxu0 0
        %1113 = vmatpush1.bf16.msra.mxu0 %v699
        %1114 = vmatprep.subr.bf16.mxu0 0
        %1115 = vmatpush1.bf16.msra.mxu0 %v700
        %1116 = vmatprep.subr.bf16.mxu0 0
        %1117 = vmatpush1.bf16.msra.mxu0 %v701
        %1118 = vmatprep.subr.bf16.mxu0 0
        %1119 = vmatpush1.bf16.msra.mxu0 %v702
        %1120 = vmatprep.subr.bf16.mxu0 0
        %1121 = vmatpush1.bf16.msra.mxu0 %v703
        %1122 = vmatprep.subr.bf16.mxu0 0
        %1123 = vmatpush1.bf16.msra.mxu0 %v704
        %1124 = vmatprep.subr.bf16.mxu0 0
        %1125 = vmatpush1.bf16.msra.mxu0 %v705
        %1126 = vmatprep.subr.bf16.mxu0 0
        %1127 = vmatpush1.bf16.msra.mxu0 %v706
        %1128 = vmatprep.subr.bf16.mxu0 0
        %1129 = vmatpush1.bf16.msra.mxu0 %v707
        %1130 = vmatprep.subr.bf16.mxu0 0
        %1131 = vmatpush1.bf16.msra.mxu0 %v708
        %1132 = vmatprep.subr.bf16.mxu0 0
        %1133 = vmatpush1.bf16.msra.mxu0 %v709
        %1134 = vmatprep.subr.bf16.mxu0 0
        %1135 = vmatpush1.bf16.msra.mxu0 %v710
        %1136 = vmatprep.subr.bf16.mxu0 0
        %1137 = vmatpush1.bf16.msra.mxu0 %v711
        %1138 = vmatprep.mubr.bf16.mxu0 %v949
        %1139 = vmatmul.mubr.bf16.gmra.mrb[0].mxu0 %v948
        %v1140 = vpop.f32.mrb[0].mxu0
        %v1141 = vadd.f32 %v1092, %v1140
        %v1142 = vpop.f32.mrb[0].mxu0
        %v1143 = vpop.f32.mrb[0].mxu0
        %v1144 = vadd.f32 %v1095, %v1143
        %v1145 = vpop.f32.mrb[0].mxu0
        %1146 = vmatprep.mubr.bf16.mxu0 %v965
        %1147 = vmatmul.mubr.bf16.gmra.mrb[0].mxu0 %v964
        %v1148 = vpop.f32.mrb[0].mxu0
        %v1149 = vadd.f32 %v1100, %v1148
        %v1150 = vpop.f32.mrb[0].mxu0
        %v1151 = vpop.f32.mrb[0].mxu0
        %v1152 = vadd.f32 %v1103, %v1151
        %v1153 = vpop.f32.mrb[0].mxu0
        %1154 = vdwg.mxu0
        %1155 = vmatprep.subr.bf16.mxu0 0
        %1156 = vmatpush1.bf16.msra.mxu0 %v712
        %1157 = vmatprep.subr.bf16.mxu0 0
        %1158 = vmatpush1.bf16.msra.mxu0 %v713
        %1159 = vmatprep.subr.bf16.mxu0 0
        %1160 = vmatpush1.bf16.msra.mxu0 %v714
        %1161 = vmatprep.subr.bf16.mxu0 0
        %1162 = vmatpush1.bf16.msra.mxu0 %v715
        %1163 = vmatprep.subr.bf16.mxu0 0
        %1164 = vmatpush1.bf16.msra.mxu0 %v716
        %1165 = vmatprep.subr.bf16.mxu0 0
        %1166 = vmatpush1.bf16.msra.mxu0 %v717
        %1167 = vmatprep.subr.bf16.mxu0 0
        %1168 = vmatpush1.bf16.msra.mxu0 %v718
        %1169 = vmatprep.subr.bf16.mxu0 0
        %1170 = vmatpush1.bf16.msra.mxu0 %v719
        %1171 = vmatprep.subr.bf16.mxu0 0
        %1172 = vmatpush1.bf16.msra.mxu0 %v720
        %1173 = vmatprep.subr.bf16.mxu0 0
        %1174 = vmatpush1.bf16.msra.mxu0 %v721
        %1175 = vmatprep.subr.bf16.mxu0 0
        %1176 = vmatpush1.bf16.msra.mxu0 %v722
        %1177 = vmatprep.subr.bf16.mxu0 0
        %1178 = vmatpush1.bf16.msra.mxu0 %v723
        %1179 = vmatprep.subr.bf16.mxu0 0
        %1180 = vmatpush1.bf16.msra.mxu0 %v724
        %1181 = vmatprep.subr.bf16.mxu0 0
        %1182 = vmatpush1.bf16.msra.mxu0 %v725
        %1183 = vmatprep.subr.bf16.mxu0 0
        %1184 = vmatpush1.bf16.msra.mxu0 %v726
        %1185 = vmatprep.subr.bf16.mxu0 0
        %1186 = vmatpush1.bf16.msra.mxu0 %v727
        %1187 = vmatprep.mubr.bf16.mxu0 %v951
        %1188 = vmatmul.mubr.bf16.gmra.mrb[0].mxu0 %v950
        %v1189 = vpop.f32.mrb[0].mxu0
        %v1190 = vadd.f32 %v1141, %v1189
        %v1191 = vpop.f32.mrb[0].mxu0
        %v1192 = vpop.f32.mrb[0].mxu0
        %v1193 = vadd.f32 %v1144, %v1192
        %v1194 = vpop.f32.mrb[0].mxu0
        %1195 = vmatprep.mubr.bf16.mxu0 %v967
        %1196 = vmatmul.mubr.bf16.gmra.mrb[0].mxu0 %v966
        %v1197 = vpop.f32.mrb[0].mxu0
        %v1198 = vadd.f32 %v1149, %v1197
        %v1199 = vpop.f32.mrb[0].mxu0
        %v1200 = vpop.f32.mrb[0].mxu0
        %v1201 = vadd.f32 %v1152, %v1200
        %v1202 = vpop.f32.mrb[0].mxu0
        %1203 = vdwg.mxu0
        %1204 = vmatprep.subr.bf16.mxu0 0
        %1205 = vmatpush1.bf16.msra.mxu0 %v728
        %1206 = vmatprep.subr.bf16.mxu0 0
        %1207 = vmatpush1.bf16.msra.mxu0 %v729
        %1208 = vmatprep.subr.bf16.mxu0 0
        %1209 = vmatpush1.bf16.msra.mxu0 %v730
        %1210 = vmatprep.subr.bf16.mxu0 0
        %1211 = vmatpush1.bf16.msra.mxu0 %v731
        %1212 = vmatprep.subr.bf16.mxu0 0
        %1213 = vmatpush1.bf16.msra.mxu0 %v732
        %1214 = vmatprep.subr.bf16.mxu0 0
        %1215 = vmatpush1.bf16.msra.mxu0 %v733
        %1216 = vmatprep.subr.bf16.mxu0 0
        %1217 = vmatpush1.bf16.msra.mxu0 %v734
        %1218 = vmatprep.subr.bf16.mxu0 0
        %1219 = vmatpush1.bf16.msra.mxu0 %v735
        %1220 = vmatprep.subr.bf16.mxu0 0
        %1221 = vmatpush1.bf16.msra.mxu0 %v736
        %1222 = vmatprep.subr.bf16.mxu0 0
        %1223 = vmatpush1.bf16.msra.mxu0 %v737
        %1224 = vmatprep.subr.bf16.mxu0 0
        %1225 = vmatpush1.bf16.msra.mxu0 %v738
        %1226 = vmatprep.subr.bf16.mxu0 0
        %1227 = vmatpush1.bf16.msra.mxu0 %v739
        %1228 = vmatprep.subr.bf16.mxu0 0
        %1229 = vmatpush1.bf16.msra.mxu0 %v740
        %1230 = vmatprep.subr.bf16.mxu0 0
        %1231 = vmatpush1.bf16.msra.mxu0 %v741
        %1232 = vmatprep.subr.bf16.mxu0 0
        %1233 = vmatpush1.bf16.msra.mxu0 %v742
        %1234 = vmatprep.subr.bf16.mxu0 0
        %1235 = vmatpush1.bf16.msra.mxu0 %v743
        %1236 = vmatprep.mubr.bf16.mxu0 %v953
        %1237 = vmatmul.mubr.bf16.gmra.mrb[0].mxu0 %v952
        %v1238 = vpop.f32.mrb[0].mxu0
        %v1239 = vadd.f32 %v1190, %v1238
        %v1240 = vpop.f32.mrb[0].mxu0
        %v1241 = vpop.f32.mrb[0].mxu0
        %v1242 = vadd.f32 %v1193, %v1241
        %v1243 = vpop.f32.mrb[0].mxu0
        %1244 = vmatprep.mubr.bf16.mxu0 %v969
        %1245 = vmatmul.mubr.bf16.gmra.mrb[0].mxu0 %v968
        %v1246 = vpop.f32.mrb[0].mxu0
        %v1247 = vadd.f32 %v1198, %v1246
        %v1248 = vpop.f32.mrb[0].mxu0
        %v1249 = vpop.f32.mrb[0].mxu0
        %v1250 = vadd.f32 %v1201, %v1249
        %v1251 = vpop.f32.mrb[0].mxu0
        %1252 = vdwg.mxu0
        %1253 = vmatprep.subr.bf16.mxu0 0
        %1254 = vmatpush1.bf16.msra.mxu0 %v744
        %1255 = vmatprep.subr.bf16.mxu0 0
        %1256 = vmatpush1.bf16.msra.mxu0 %v745
        %1257 = vmatprep.subr.bf16.mxu0 0
        %1258 = vmatpush1.bf16.msra.mxu0 %v746
        %1259 = vmatprep.subr.bf16.mxu0 0
        %1260 = vmatpush1.bf16.msra.mxu0 %v747
        %1261 = vmatprep.subr.bf16.mxu0 0
        %1262 = vmatpush1.bf16.msra.mxu0 %v748
        %1263 = vmatprep.subr.bf16.mxu0 0
        %1264 = vmatpush1.bf16.msra.mxu0 %v749
        %1265 = vmatprep.subr.bf16.mxu0 0
        %1266 = vmatpush1.bf16.msra.mxu0 %v750
        %1267 = vmatprep.subr.bf16.mxu0 0
        %1268 = vmatpush1.bf16.msra.mxu0 %v751
        %1269 = vmatprep.subr.bf16.mxu0 0
        %1270 = vmatpush1.bf16.msra.mxu0 %v752
        %1271 = vmatprep.subr.bf16.mxu0 0
        %1272 = vmatpush1.bf16.msra.mxu0 %v753
        %1273 = vmatprep.subr.bf16.mxu0 0
        %1274 = vmatpush1.bf16.msra.mxu0 %v754
        %1275 = vmatprep.subr.bf16.mxu0 0
        %1276 = vmatpush1.bf16.msra.mxu0 %v755
        %1277 = vmatprep.subr.bf16.mxu0 0
        %1278 = vmatpush1.bf16.msra.mxu0 %v756
        %1279 = vmatprep.subr.bf16.mxu0 0
        %1280 = vmatpush1.bf16.msra.mxu0 %v757
        %1281 = vmatprep.subr.bf16.mxu0 0
        %1282 = vmatpush1.bf16.msra.mxu0 %v758
        %1283 = vmatprep.subr.bf16.mxu0 0
        %1284 = vmatpush1.bf16.msra.mxu0 %v759
        %1285 = vmatprep.mubr.bf16.mxu0 %v955
        %1286 = vmatmul.mubr.bf16.gmra.mrb[0].mxu0 %v954
        %v1287 = vpop.f32.mrb[0].mxu0
        %v1288 = vadd.f32 %v1239, %v1287
        %v1289 = vpop.f32.mrb[0].mxu0
        %v1290 = vpop.f32.mrb[0].mxu0
        %v1291 = vadd.f32 %v1242, %v1290
        %v1292 = vpop.f32.mrb[0].mxu0
        %1293 = vmatprep.mubr.bf16.mxu0 %v971
        %1294 = vmatmul.mubr.bf16.gmra.mrb[0].mxu0 %v970
        %v1295 = vpop.f32.mrb[0].mxu0
        %v1296 = vadd.f32 %v1247, %v1295
        %v1297 = vpop.f32.mrb[0].mxu0
        %v1298 = vpop.f32.mrb[0].mxu0
        %v1299 = vadd.f32 %v1250, %v1298
        %v1300 = vpop.f32.mrb[0].mxu0
        %1301 = vdwg.mxu0
        %1302 = vmatprep.subr.bf16.mxu0 0
        %1303 = vmatpush1.bf16.msra.mxu0 %v760
        %1304 = vmatprep.subr.bf16.mxu0 0
        %1305 = vmatpush1.bf16.msra.mxu0 %v761
        %1306 = vmatprep.subr.bf16.mxu0 0
        %1307 = vmatpush1.bf16.msra.mxu0 %v762
        %1308 = vmatprep.subr.bf16.mxu0 0
        %1309 = vmatpush1.bf16.msra.mxu0 %v763
        %1310 = vmatprep.subr.bf16.mxu0 0
        %1311 = vmatpush1.bf16.msra.mxu0 %v764
        %1312 = vmatprep.subr.bf16.mxu0 0
        %1313 = vmatpush1.bf16.msra.mxu0 %v765
        %1314 = vmatprep.subr.bf16.mxu0 0
        %1315 = vmatpush1.bf16.msra.mxu0 %v766
        %1316 = vmatprep.subr.bf16.mxu0 0
        %1317 = vmatpush1.bf16.msra.mxu0 %v767
        %1318 = vmatprep.subr.bf16.mxu0 0
        %1319 = vmatpush1.bf16.msra.mxu0 %v768
        %1320 = vmatprep.subr.bf16.mxu0 0
        %1321 = vmatpush1.bf16.msra.mxu0 %v769
        %1322 = vmatprep.subr.bf16.mxu0 0
        %1323 = vmatpush1.bf16.msra.mxu0 %v770
        %1324 = vmatprep.subr.bf16.mxu0 0
        %1325 = vmatpush1.bf16.msra.mxu0 %v771
        %1326 = vmatprep.subr.bf16.mxu0 0
        %1327 = vmatpush1.bf16.msra.mxu0 %v772
        %1328 = vmatprep.subr.bf16.mxu0 0
        %1329 = vmatpush1.bf16.msra.mxu0 %v773
        %1330 = vmatprep.subr.bf16.mxu0 0
        %1331 = vmatpush1.bf16.msra.mxu0 %v774
        %1332 = vmatprep.subr.bf16.mxu0 0
        %1333 = vmatpush1.bf16.msra.mxu0 %v775
        %1334 = vmatprep.mubr.bf16.mxu0 %v957
        %1335 = vmatmul.mubr.bf16.gmra.mrb[0].mxu0 %v956
        %v1336 = vpop.f32.mrb[0].mxu0
        %v1337 = vadd.f32 %v1288, %v1336
        %v1338 = vpop.f32.mrb[0].mxu0
        %v1339 = vpop.f32.mrb[0].mxu0
        %v1340 = vadd.f32 %v1291, %v1339
        %v1341 = vpop.f32.mrb[0].mxu0
        %1342 = vmatprep.mubr.bf16.mxu0 %v973
        %1343 = vmatmul.mubr.bf16.gmra.mrb[0].mxu0 %v972
        %v1344 = vpop.f32.mrb[0].mxu0
        %v1345 = vadd.f32 %v1296, %v1344
        %v1346 = vpop.f32.mrb[0].mxu0
        %v1347 = vpop.f32.mrb[0].mxu0
        %v1348 = vadd.f32 %v1299, %v1347
        %v1349 = vpop.f32.mrb[0].mxu0
        %1350 = vdwg.mxu0
        %1351 = vmatprep.subr.bf16.mxu0 0
        %1352 = vmatpush1.bf16.msra.mxu0 %v776
        %1353 = vmatprep.subr.bf16.mxu0 0
        %1354 = vmatpush1.bf16.msra.mxu0 %v777
        %1355 = vmatprep.subr.bf16.mxu0 0
        %1356 = vmatpush1.bf16.msra.mxu0 %v778
        %1357 = vmatprep.subr.bf16.mxu0 0
        %1358 = vmatpush1.bf16.msra.mxu0 %v779
        %1359 = vmatprep.subr.bf16.mxu0 0
        %1360 = vmatpush1.bf16.msra.mxu0 %v780
        %1361 = vmatprep.subr.bf16.mxu0 0
        %1362 = vmatpush1.bf16.msra.mxu0 %v781
        %1363 = vmatprep.subr.bf16.mxu0 0
        %1364 = vmatpush1.bf16.msra.mxu0 %v782
        %1365 = vmatprep.subr.bf16.mxu0 0
        %1366 = vmatpush1.bf16.msra.mxu0 %v783
        %1367 = vmatprep.subr.bf16.mxu0 0
        %1368 = vmatpush1.bf16.msra.mxu0 %v784
        %1369 = vmatprep.subr.bf16.mxu0 0
        %1370 = vmatpush1.bf16.msra.mxu0 %v785
        %1371 = vmatprep.subr.bf16.mxu0 0
        %1372 = vmatpush1.bf16.msra.mxu0 %v786
        %1373 = vmatprep.subr.bf16.mxu0 0
        %1374 = vmatpush1.bf16.msra.mxu0 %v787
        %1375 = vmatprep.subr.bf16.mxu0 0
        %1376 = vmatpush1.bf16.msra.mxu0 %v788
        %1377 = vmatprep.subr.bf16.mxu0 0
        %1378 = vmatpush1.bf16.msra.mxu0 %v789
        %1379 = vmatprep.subr.bf16.mxu0 0
        %1380 = vmatpush1.bf16.msra.mxu0 %v790
        %1381 = vmatprep.subr.bf16.mxu0 0
        %1382 = vmatpush1.bf16.msra.mxu0 %v791
        %1383 = vmatprep.mubr.bf16.mxu0 %v959
        %1384 = vmatmul.mubr.bf16.gmra.mrb[0].mxu0 %v958
        %v1385 = vpop.f32.mrb[0].mxu0
        %v1386 = vadd.f32 %v1337, %v1385
        %v1387 = vpop.f32.mrb[0].mxu0
        %v1388 = vpop.f32.mrb[0].mxu0
        %v1389 = vadd.f32 %v1340, %v1388
        %v1390 = vpop.f32.mrb[0].mxu0
        %1391 = vmatprep.mubr.bf16.mxu0 %v975
        %1392 = vmatmul.mubr.bf16.gmra.mrb[0].mxu0 %v974
        %v1393 = vpop.f32.mrb[0].mxu0
        %v1394 = vadd.f32 %v1345, %v1393
        %v1395 = vpop.f32.mrb[0].mxu0
        %v1396 = vpop.f32.mrb[0].mxu0
        %v1397 = vadd.f32 %v1348, %v1396
        %v1398 = vpop.f32.mrb[0].mxu0
        %1399 = vdwg.mxu0
        %v1400 = vlaneseq
        %v1401 = vand.u32 %v1400, 127
        %vm1402 = vcmp.lt.s32.totalorder %v1401, 16
        %v1403 = vsel %vm1402, %v1386, 0.0
        %v1404 = vsel %vm1402, %v1389, 0.0
        %v1405 = vsel %vm1402, %v1394, 0.0
        %v1406 = vsel %vm1402, %v1397, 0.0
        %1407 = vrot.lane.b32.xlu0 %v1403, 1
        %v1408 = vpop.permute.xlu0 %1407
        %1409 = vrot.lane.b32.xlu0 %v1404, 1
        %v1410 = vpop.permute.xlu0 %1409
        %1411 = vrot.lane.b32.xlu0 %v1405, 1
        %v1412 = vpop.permute.xlu0 %1411
        %1413 = vrot.lane.b32.xlu0 %v1406, 1
        %v1414 = vpop.permute.xlu0 %1413
        %1415 = vrot.lane.b32.xlu0 %v1403, 127
        %v1416 = vpop.permute.xlu0 %1415
        %1417 = vrot.lane.b32.xlu0 %v1404, 127
        %v1418 = vpop.permute.xlu0 %1417
        %1419 = vrot.lane.b32.xlu0 %v1405, 127
        %v1420 = vpop.permute.xlu0 %1419
        %1421 = vrot.lane.b32.xlu0 %v1406, 127
        %v1422 = vpop.permute.xlu0 %1421
        %v1423 = vpack.c.bf16 %v1410, %v1408
        %v1424 = vpack.c.bf16 %v1414, %v1412
        %v1425 = vpack.c.bf16 %v1404, %v1403
        %v1426 = vpack.c.bf16 %v1406, %v1405
        %v1427 = vpack.c.bf16 %v1418, %v1416
        %v1428 = vpack.c.bf16 %v1422, %v1420
        %v1429 = vld [vmem:[#allocation7] sm:$0xf]
        %v1430 = vld [vmem:[#allocation7 + $0x4] sm:$0xf]
        %v1431 = vld [vmem:[#allocation7 + $0x8] sm:$0xf]
        %v1432 = vld [vmem:[#allocation7 + $0xc] sm:$0xf]
        %v1433 = vld [vmem:[%s4] sm:$0xff]
        %v1434 = vld [vmem:[%s4 + $0x8] sm:$0xff]
        %v1435 = vld [vmem:[%s4 + $0x10] sm:$0xff]
        %v1436 = vld [vmem:[%s4 + $0x18] sm:$0xff]
        %1438 = vset.pattern.permute.xlu0 0
        %1439 = vperm.xlu0 %1438, %v1433
        %v1440 = vpop.permute.xlu0 %1439
        %1443 = vset.pattern.permute.xlu0 0
        %1444 = vperm.xlu0 %1443, %v1434
        %v1445 = vpop.permute.xlu0 %1444
        %1448 = vset.pattern.permute.xlu0 0
        %1449 = vperm.xlu0 %1448, %v1435
        %v1450 = vpop.permute.xlu0 %1449
        %1453 = vset.pattern.permute.xlu0 0
        %1454 = vperm.xlu0 %1453, %v1436
        %v1455 = vpop.permute.xlu0 %1454
        %v1461 = vunpack.c.l.b16 %v1429
        %v1462 = vunpack.c.l.b16 %v1430
        %v1463 = vunpack.c.l.b16 %v1431
        %v1464 = vunpack.c.l.b16 %v1432
        %v1465 = vpack.c.b16 %v1462, %v1461
        %v1466 = vpack.c.b16 %v1464, %v1463
        %vm1467 = vcmask 785408
        %v1469 = vsel %vm1467, %v1465, 0
        %v1472 = vsel %vm1467, %v1466, 0
        %1474 = vmatprep.subr.bf16.mxu0 0
        %1475 = vmatpush1.bf16.msra.mxu0 %v1423
        %1476 = vmatprep.subr.bf16.mxu0 0
        %1477 = vmatpush1.bf16.msra.mxu0 %v1424
        %1478 = vmatprep.subr.bf16.mxu0 0
        %1479 = vmatpush1.bf16.msra.mxu0 %v1425
        %1480 = vmatprep.subr.bf16.mxu0 0
        %1481 = vmatpush1.bf16.msra.mxu0 %v1426
        %1482 = vmatprep.subr.bf16.mxu0 0
        %1483 = vmatpush1.bf16.msra.mxu0 %v1427
        %1484 = vmatprep.subr.bf16.mxu0 0
        %1485 = vmatpush1.bf16.msra.mxu0 %v1428
        %1486 = vmatprep.subr.bf16.mxu0 0
        %1487 = vmatpush1.bf16.msra.mxu0 0
        %1488 = vmatprep.subr.bf16.mxu0 0
        %1489 = vmatpush1.bf16.msra.mxu0 0
        %1490 = vmatprep.subr.bf16.mxu0 0
        %1491 = vmatpush1.bf16.msra.mxu0 0
        %1492 = vmatprep.subr.bf16.mxu0 0
        %1493 = vmatpush1.bf16.msra.mxu0 0
        %1494 = vmatprep.subr.bf16.mxu0 0
        %1495 = vmatpush1.bf16.msra.mxu0 0
        %1496 = vmatprep.subr.bf16.mxu0 0
        %1497 = vmatpush1.bf16.msra.mxu0 0
        %1498 = vmatprep.subr.bf16.mxu0 0
        %1499 = vmatpush1.bf16.msra.mxu0 0
        %1500 = vmatprep.subr.bf16.mxu0 0
        %1501 = vmatpush1.bf16.msra.mxu0 0
        %1502 = vmatprep.subr.bf16.mxu0 0
        %1503 = vmatpush1.bf16.msra.mxu0 0
        %1504 = vmatprep.subr.bf16.mxu0 0
        %1505 = vmatpush1.bf16.msra.mxu0 0
        %1506 = vmatprep.mubr.bf16.mxu0 0
        %1507 = vmatmul.mubr.bf16.gmra.mrb[0].mxu0 %v1469
        %v1508 = vpop.f32.mrb[0].mxu0
        %v1509 = vadd.f32 %v1440, %v1508
        %v1510 = vpop.f32.mrb[0].mxu0
        %v1511 = vpop.f32.mrb[0].mxu0
        %v1512 = vadd.f32 %v1445, %v1511
        %v1513 = vpop.f32.mrb[0].mxu0
        %1514 = vmatprep.mubr.bf16.mxu0 0
        %1515 = vmatmul.mubr.bf16.gmra.mrb[0].mxu0 %v1472
        %v1516 = vpop.f32.mrb[0].mxu0
        %v1517 = vadd.f32 %v1450, %v1516
        %v1518 = vpop.f32.mrb[0].mxu0
        %v1519 = vpop.f32.mrb[0].mxu0
        %v1520 = vadd.f32 %v1455, %v1519
        %v1521 = vpop.f32.mrb[0].mxu0
        %1522 = vdwg.mxu0
        %v1523 = vmax.f32 %v1509, 0.0
        %v1524 = vmax.f32 %v1512, 0.0
        %v1525 = vmax.f32 %v1517, 0.0
        %v1526 = vmax.f32 %v1520, 0.0
        %v1527 = vld [vmem:[#allocation8] sm:$0xf]
        %v1528 = vld [vmem:[#allocation8 + $0x4] sm:$0xf]
        %v1529 = vld [vmem:[#allocation8 + $0x8] sm:$0xf]
        %v1530 = vld [vmem:[#allocation8 + $0xc] sm:$0xf]
        %v1531 = vpack.c.bf16 %v1524, %v1523
        %v1532 = vpack.c.bf16 %v1526, %v1525
        %v1533 = vld [vmem:[%s6] sm:$0xff]
        %v1534 = vld [vmem:[%s6 + $0x8] sm:$0xff]
        %v1535 = vld [vmem:[%s6 + $0x10] sm:$0xff]
        %v1536 = vld [vmem:[%s6 + $0x18] sm:$0xff]
        %1538 = vset.pattern.permute.xlu0 0
        %1539 = vperm.xlu0 %1538, %v1533
        %v1540 = vpop.permute.xlu0 %1539
        %1543 = vset.pattern.permute.xlu0 0
        %1544 = vperm.xlu0 %1543, %v1534
        %v1545 = vpop.permute.xlu0 %1544
        %1548 = vset.pattern.permute.xlu0 0
        %1549 = vperm.xlu0 %1548, %v1535
        %v1550 = vpop.permute.xlu0 %1549
        %1553 = vset.pattern.permute.xlu0 0
        %1554 = vperm.xlu0 %1553, %v1536
        %v1555 = vpop.permute.xlu0 %1554
        %v1561 = vunpack.c.l.b16 %v1527
        %v1562 = vunpack.c.l.b16 %v1528
        %v1563 = vunpack.c.l.b16 %v1529
        %v1564 = vunpack.c.l.b16 %v1530
        %v1565 = vpack.c.b16 %v1562, %v1561
        %v1566 = vpack.c.b16 %v1564, %v1563
        %vm1567 = vcmask 261120
        %v1569 = vsel %vm1567, %v1565, 0
        %v1572 = vsel %vm1567, %v1566, 0
        %1574 = vmatprep.subr.bf16.mxu0 0
        %1575 = vmatpush1.bf16.msra.mxu0 %v1531
        %1576 = vmatprep.subr.bf16.mxu0 0
        %1577 = vmatpush1.bf16.msra.mxu0 %v1532
        %1578 = vmatprep.subr.bf16.mxu0 0
        %1579 = vmatpush1.bf16.msra.mxu0 0
        %1580 = vmatprep.subr.bf16.mxu0 0
        %1581 = vmatpush1.bf16.msra.mxu0 0
        %1582 = vmatprep.subr.bf16.mxu0 0
        %1583 = vmatpush1.bf16.msra.mxu0 0
        %1584 = vmatprep.subr.bf16.mxu0 0
        %1585 = vmatpush1.bf16.msra.mxu0 0
        %1586 = vmatprep.subr.bf16.mxu0 0
        %1587 = vmatpush1.bf16.msra.mxu0 0
        %1588 = vmatprep.subr.bf16.mxu0 0
        %1589 = vmatpush1.bf16.msra.mxu0 0
        %1590 = vmatprep.subr.bf16.mxu0 0
        %1591 = vmatpush1.bf16.msra.mxu0 0
        %1592 = vmatprep.subr.bf16.mxu0 0
        %1593 = vmatpush1.bf16.msra.mxu0 0
        %1594 = vmatprep.subr.bf16.mxu0 0
        %1595 = vmatpush1.bf16.msra.mxu0 0
        %1596 = vmatprep.subr.bf16.mxu0 0
        %1597 = vmatpush1.bf16.msra.mxu0 0
        %1598 = vmatprep.subr.bf16.mxu0 0
        %1599 = vmatpush1.bf16.msra.mxu0 0
        %1600 = vmatprep.subr.bf16.mxu0 0
        %1601 = vmatpush1.bf16.msra.mxu0 0
        %1602 = vmatprep.subr.bf16.mxu0 0
        %1603 = vmatpush1.bf16.msra.mxu0 0
        %1604 = vmatprep.subr.bf16.mxu0 0
        %1605 = vmatpush1.bf16.msra.mxu0 0
        %1606 = vmatprep.mubr.bf16.mxu0 0
        %1607 = vmatmul.mubr.bf16.gmra.mrb[0].mxu0 %v1569
        %v1608 = vpop.f32.mrb[0].mxu0
        %v1609 = vadd.f32 %v1540, %v1608
        %v1610 = vpop.f32.mrb[0].mxu0
        %v1611 = vpop.f32.mrb[0].mxu0
        %v1612 = vadd.f32 %v1545, %v1611
        %v1613 = vpop.f32.mrb[0].mxu0
        %1614 = vmatprep.mubr.bf16.mxu0 0
        %1615 = vmatmul.mubr.bf16.gmra.mrb[0].mxu0 %v1572
        %v1616 = vpop.f32.mrb[0].mxu0
        %v1617 = vadd.f32 %v1550, %v1616
        %v1618 = vpop.f32.mrb[0].mxu0
        %v1619 = vpop.f32.mrb[0].mxu0
        %v1620 = vadd.f32 %v1555, %v1619
        %v1621 = vpop.f32.mrb[0].mxu0
        %1622 = vdwg.mxu0
        %v1623 = vadd.f32 %v1609, %v1386
        %v1624 = vadd.f32 %v1612, %v1389
        %v1625 = vadd.f32 %v1617, %v1394
        %v1626 = vadd.f32 %v1620, %v1397
        %v1627 = vsel %vm1402, %v1623, 0.0
        %v1628 = vsel %vm1402, %v1624, 0.0
        %v1629 = vsel %vm1402, %v1625, 0.0
        %v1630 = vsel %vm1402, %v1626, 0.0
        %1631 = vrot.lane.b32.xlu0 %v1627, 2
        %v1632 = vpop.permute.xlu0 %1631
        %1633 = vrot.lane.b32.xlu0 %v1628, 2
        %v1634 = vpop.permute.xlu0 %1633
        %1635 = vrot.lane.b32.xlu0 %v1629, 2
        %v1636 = vpop.permute.xlu0 %1635
        %1637 = vrot.lane.b32.xlu0 %v1630, 2
        %v1638 = vpop.permute.xlu0 %1637
        %1639 = vrot.lane.b32.xlu0 %v1627, 126
        %v1640 = vpop.permute.xlu0 %1639
        %1641 = vrot.lane.b32.xlu0 %v1628, 126
        %v1642 = vpop.permute.xlu0 %1641
        %1643 = vrot.lane.b32.xlu0 %v1629, 126
        %v1644 = vpop.permute.xlu0 %1643
        %1645 = vrot.lane.b32.xlu0 %v1630, 126
        %v1646 = vpop.permute.xlu0 %1645
        %v1647 = vpack.c.bf16 %v1634, %v1632
        %v1648 = vpack.c.bf16 %v1638, %v1636
        %v1649 = vpack.c.bf16 %v1628, %v1627
        %v1650 = vpack.c.bf16 %v1630, %v1629
        %v1651 = vpack.c.bf16 %v1642, %v1640
        %v1652 = vpack.c.bf16 %v1646, %v1644
        %s1653 = scalar_lea.vmem [#allocation7], 16
        %v1654 = vld [vmem:[%s1653] sm:$0xf]
        %v1655 = vld [vmem:[%s1653 + $0x4] sm:$0xf]
        %v1656 = vld [vmem:[%s1653 + $0x8] sm:$0xf]
        %v1657 = vld [vmem:[%s1653 + $0xc] sm:$0xf]
        %s1658 = scalar_lea.vmem %s4, 32
        %v1659 = vld [vmem:[%s1658] sm:$0xff]
        %v1660 = vld [vmem:[%s1658 + $0x8] sm:$0xff]
        %v1661 = vld [vmem:[%s1658 + $0x10] sm:$0xff]
        %v1662 = vld [vmem:[%s1658 + $0x18] sm:$0xff]
        %1664 = vset.pattern.permute.xlu0 0
        %1665 = vperm.xlu0 %1664, %v1659
        %v1666 = vpop.permute.xlu0 %1665
        %1669 = vset.pattern.permute.xlu0 0
        %1670 = vperm.xlu0 %1669, %v1660
        %v1671 = vpop.permute.xlu0 %1670
        %1674 = vset.pattern.permute.xlu0 0
        %1675 = vperm.xlu0 %1674, %v1661
        %v1676 = vpop.permute.xlu0 %1675
        %1679 = vset.pattern.permute.xlu0 0
        %1680 = vperm.xlu0 %1679, %v1662
        %v1681 = vpop.permute.xlu0 %1680
        %v1687 = vunpack.c.l.b16 %v1654
        %v1688 = vunpack.c.l.b16 %v1655
        %v1689 = vunpack.c.l.b16 %v1656
        %v1690 = vunpack.c.l.b16 %v1657
        %v1691 = vpack.c.b16 %v1688, %v1687
        %v1692 = vpack.c.b16 %v1690, %v1689
        %v1694 = vsel %vm1467, %v1691, 0
        %v1697 = vsel %vm1467, %v1692, 0
        %1699 = vmatprep.subr.bf16.mxu0 0
        %1700 = vmatpush1.bf16.msra.mxu0 %v1647
        %1701 = vmatprep.subr.bf16.mxu0 0
        %1702 = vmatpush1.bf16.msra.mxu0 %v1648
        %1703 = vmatprep.subr.bf16.mxu0 0
        %1704 = vmatpush1.bf16.msra.mxu0 %v1649
        %1705 = vmatprep.subr.bf16.mxu0 0
        %1706 = vmatpush1.bf16.msra.mxu0 %v1650
        %1707 = vmatprep.subr.bf16.mxu0 0
        %1708 = vmatpush1.bf16.msra.mxu0 %v1651
        %1709 = vmatprep.subr.bf16.mxu0 0
        %1710 = vmatpush1.bf16.msra.mxu0 %v1652
        %1711 = vmatprep.subr.bf16.mxu0 0
        %1712 = vmatpush1.bf16.msra.mxu0 0
        %1713 = vmatprep.subr.bf16.mxu0 0
        %1714 = vmatpush1.bf16.msra.mxu0 0
        %1715 = vmatprep.subr.bf16.mxu0 0
        %1716 = vmatpush1.bf16.msra.mxu0 0
        %1717 = vmatprep.subr.bf16.mxu0 0
        %1718 = vmatpush1.bf16.msra.mxu0 0
        %1719 = vmatprep.subr.bf16.mxu0 0
        %1720 = vmatpush1.bf16.msra.mxu0 0
        %1721 = vmatprep.subr.bf16.mxu0 0
        %1722 = vmatpush1.bf16.msra.mxu0 0
        %1723 = vmatprep.subr.bf16.mxu0 0
        %1724 = vmatpush1.bf16.msra.mxu0 0
        %1725 = vmatprep.subr.bf16.mxu0 0
        %1726 = vmatpush1.bf16.msra.mxu0 0
        %1727 = vmatprep.subr.bf16.mxu0 0
        %1728 = vmatpush1.bf16.msra.mxu0 0
        %1729 = vmatprep.subr.bf16.mxu0 0
        %1730 = vmatpush1.bf16.msra.mxu0 0
        %1731 = vmatprep.mubr.bf16.mxu0 0
        %1732 = vmatmul.mubr.bf16.gmra.mrb[0].mxu0 %v1694
        %v1733 = vpop.f32.mrb[0].mxu0
        %v1734 = vadd.f32 %v1666, %v1733
        %v1735 = vpop.f32.mrb[0].mxu0
        %v1736 = vpop.f32.mrb[0].mxu0
        %v1737 = vadd.f32 %v1671, %v1736
        %v1738 = vpop.f32.mrb[0].mxu0
        %1739 = vmatprep.mubr.bf16.mxu0 0
        %1740 = vmatmul.mubr.bf16.gmra.mrb[0].mxu0 %v1697
        %v1741 = vpop.f32.mrb[0].mxu0
        %v1742 = vadd.f32 %v1676, %v1741
        %v1743 = vpop.f32.mrb[0].mxu0
        %v1744 = vpop.f32.mrb[0].mxu0
        %v1745 = vadd.f32 %v1681, %v1744
        %v1746 = vpop.f32.mrb[0].mxu0
        %1747 = vdwg.mxu0
        %v1748 = vmax.f32 %v1734, 0.0
        %v1749 = vmax.f32 %v1737, 0.0
        %v1750 = vmax.f32 %v1742, 0.0
        %v1751 = vmax.f32 %v1745, 0.0
        %s1752 = scalar_lea.vmem [#allocation8], 16
        %v1753 = vld [vmem:[%s1752] sm:$0xf]
        %v1754 = vld [vmem:[%s1752 + $0x4] sm:$0xf]
        %v1755 = vld [vmem:[%s1752 + $0x8] sm:$0xf]
        %v1756 = vld [vmem:[%s1752 + $0xc] sm:$0xf]
        %v1757 = vpack.c.bf16 %v1749, %v1748
        %v1758 = vpack.c.bf16 %v1751, %v1750
        %s1759 = scalar_lea.vmem %s6, 32
        %v1760 = vld [vmem:[%s1759] sm:$0xff]
        %v1761 = vld [vmem:[%s1759 + $0x8] sm:$0xff]
        %v1762 = vld [vmem:[%s1759 + $0x10] sm:$0xff]
        %v1763 = vld [vmem:[%s1759 + $0x18] sm:$0xff]
        %1765 = vset.pattern.permute.xlu0 0
        %1766 = vperm.xlu0 %1765, %v1760
        %v1767 = vpop.permute.xlu0 %1766
        %1770 = vset.pattern.permute.xlu0 0
        %1771 = vperm.xlu0 %1770, %v1761
        %v1772 = vpop.permute.xlu0 %1771
        %1775 = vset.pattern.permute.xlu0 0
        %1776 = vperm.xlu0 %1775, %v1762
        %v1777 = vpop.permute.xlu0 %1776
        %1780 = vset.pattern.permute.xlu0 0
        %1781 = vperm.xlu0 %1780, %v1763
        %v1782 = vpop.permute.xlu0 %1781
        %v1788 = vunpack.c.l.b16 %v1753
        %v1789 = vunpack.c.l.b16 %v1754
        %v1790 = vunpack.c.l.b16 %v1755
        %v1791 = vunpack.c.l.b16 %v1756
        %v1792 = vpack.c.b16 %v1789, %v1788
        %v1793 = vpack.c.b16 %v1791, %v1790
        %v1795 = vsel %vm1567, %v1792, 0
        %v1798 = vsel %vm1567, %v1793, 0
        %1800 = vmatprep.subr.bf16.mxu0 0
        %1801 = vmatpush1.bf16.msra.mxu0 %v1757
        %1802 = vmatprep.subr.bf16.mxu0 0
        %1803 = vmatpush1.bf16.msra.mxu0 %v1758
        %1804 = vmatprep.subr.bf16.mxu0 0
        %1805 = vmatpush1.bf16.msra.mxu0 0
        %1806 = vmatprep.subr.bf16.mxu0 0
        %1807 = vmatpush1.bf16.msra.mxu0 0
        %1808 = vmatprep.subr.bf16.mxu0 0
        %1809 = vmatpush1.bf16.msra.mxu0 0
        %1810 = vmatprep.subr.bf16.mxu0 0
        %1811 = vmatpush1.bf16.msra.mxu0 0
        %1812 = vmatprep.subr.bf16.mxu0 0
        %1813 = vmatpush1.bf16.msra.mxu0 0
        %1814 = vmatprep.subr.bf16.mxu0 0
        %1815 = vmatpush1.bf16.msra.mxu0 0
        %1816 = vmatprep.subr.bf16.mxu0 0
        %1817 = vmatpush1.bf16.msra.mxu0 0
        %1818 = vmatprep.subr.bf16.mxu0 0
        %1819 = vmatpush1.bf16.msra.mxu0 0
        %1820 = vmatprep.subr.bf16.mxu0 0
        %1821 = vmatpush1.bf16.msra.mxu0 0
        %1822 = vmatprep.subr.bf16.mxu0 0
        %1823 = vmatpush1.bf16.msra.mxu0 0
        %1824 = vmatprep.subr.bf16.mxu0 0
        %1825 = vmatpush1.bf16.msra.mxu0 0
        %1826 = vmatprep.subr.bf16.mxu0 0
        %1827 = vmatpush1.bf16.msra.mxu0 0
        %1828 = vmatprep.subr.bf16.mxu0 0
        %1829 = vmatpush1.bf16.msra.mxu0 0
        %1830 = vmatprep.subr.bf16.mxu0 0
        %1831 = vmatpush1.bf16.msra.mxu0 0
        %1832 = vmatprep.mubr.bf16.mxu0 0
        %1833 = vmatmul.mubr.bf16.gmra.mrb[0].mxu0 %v1795
        %v1834 = vpop.f32.mrb[0].mxu0
        %v1835 = vadd.f32 %v1767, %v1834
        %v1836 = vpop.f32.mrb[0].mxu0
        %v1837 = vpop.f32.mrb[0].mxu0
        %v1838 = vadd.f32 %v1772, %v1837
        %v1839 = vpop.f32.mrb[0].mxu0
        %1840 = vmatprep.mubr.bf16.mxu0 0
        %1841 = vmatmul.mubr.bf16.gmra.mrb[0].mxu0 %v1798
        %v1842 = vpop.f32.mrb[0].mxu0
        %v1843 = vadd.f32 %v1777, %v1842
        %v1844 = vpop.f32.mrb[0].mxu0
        %v1845 = vpop.f32.mrb[0].mxu0
        %v1846 = vadd.f32 %v1782, %v1845
        %v1847 = vpop.f32.mrb[0].mxu0
        %1848 = vdwg.mxu0
        %v1849 = vadd.f32 %v1835, %v1623
        %v1850 = vadd.f32 %v1838, %v1624
        %v1851 = vadd.f32 %v1843, %v1625
        %v1852 = vadd.f32 %v1846, %v1626
        %v1853 = vsel %vm1402, %v1849, 0.0
        %v1854 = vsel %vm1402, %v1850, 0.0
        %v1855 = vsel %vm1402, %v1851, 0.0
        %v1856 = vsel %vm1402, %v1852, 0.0
        %1857 = vrot.lane.b32.xlu0 %v1853, 3
        %v1858 = vpop.permute.xlu0 %1857
        %1859 = vrot.lane.b32.xlu0 %v1854, 3
        %v1860 = vpop.permute.xlu0 %1859
        %1861 = vrot.lane.b32.xlu0 %v1855, 3
        %v1862 = vpop.permute.xlu0 %1861
        %1863 = vrot.lane.b32.xlu0 %v1856, 3
        %v1864 = vpop.permute.xlu0 %1863
        %1865 = vrot.lane.b32.xlu0 %v1853, 125
        %v1866 = vpop.permute.xlu0 %1865
        %1867 = vrot.lane.b32.xlu0 %v1854, 125
        %v1868 = vpop.permute.xlu0 %1867
        %1869 = vrot.lane.b32.xlu0 %v1855, 125
        %v1870 = vpop.permute.xlu0 %1869
        %1871 = vrot.lane.b32.xlu0 %v1856, 125
        %v1872 = vpop.permute.xlu0 %1871
        %v1873 = vpack.c.bf16 %v1860, %v1858
        %v1874 = vpack.c.bf16 %v1864, %v1862
        %v1875 = vpack.c.bf16 %v1854, %v1853
        %v1876 = vpack.c.bf16 %v1856, %v1855
        %v1877 = vpack.c.bf16 %v1868, %v1866
        %v1878 = vpack.c.bf16 %v1872, %v1870
        %s1879 = scalar_lea.vmem [#allocation7], 32
        %v1880 = vld [vmem:[%s1879] sm:$0xf]
        %v1881 = vld [vmem:[%s1879 + $0x4] sm:$0xf]
        %v1882 = vld [vmem:[%s1879 + $0x8] sm:$0xf]
        %v1883 = vld [vmem:[%s1879 + $0xc] sm:$0xf]
        %s1884 = scalar_lea.vmem %s4, 64
        %v1885 = vld [vmem:[%s1884] sm:$0xff]
        %v1886 = vld [vmem:[%s1884 + $0x8] sm:$0xff]
        %v1887 = vld [vmem:[%s1884 + $0x10] sm:$0xff]
        %v1888 = vld [vmem:[%s1884 + $0x18] sm:$0xff]
        %1890 = vset.pattern.permute.xlu0 0
        %1891 = vperm.xlu0 %1890, %v1885
        %v1892 = vpop.permute.xlu0 %1891
        %1895 = vset.pattern.permute.xlu0 0
        %1896 = vperm.xlu0 %1895, %v1886
        %v1897 = vpop.permute.xlu0 %1896
        %1900 = vset.pattern.permute.xlu0 0
        %1901 = vperm.xlu0 %1900, %v1887
        %v1902 = vpop.permute.xlu0 %1901
        %1905 = vset.pattern.permute.xlu0 0
        %1906 = vperm.xlu0 %1905, %v1888
        %v1907 = vpop.permute.xlu0 %1906
        %v1913 = vunpack.c.l.b16 %v1880
        %v1914 = vunpack.c.l.b16 %v1881
        %v1915 = vunpack.c.l.b16 %v1882
        %v1916 = vunpack.c.l.b16 %v1883
        %v1917 = vpack.c.b16 %v1914, %v1913
        %v1918 = vpack.c.b16 %v1916, %v1915
        %v1920 = vsel %vm1467, %v1917, 0
        %v1923 = vsel %vm1467, %v1918, 0
        %1925 = vmatprep.subr.bf16.mxu0 0
        %1926 = vmatpush1.bf16.msra.mxu0 %v1873
        %1927 = vmatprep.subr.bf16.mxu0 0
        %1928 = vmatpush1.bf16.msra.mxu0 %v1874
        %1929 = vmatprep.subr.bf16.mxu0 0
        %1930 = vmatpush1.bf16.msra.mxu0 %v1875
        %1931 = vmatprep.subr.bf16.mxu0 0
        %1932 = vmatpush1.bf16.msra.mxu0 %v1876
        %1933 = vmatprep.subr.bf16.mxu0 0
        %1934 = vmatpush1.bf16.msra.mxu0 %v1877
        %1935 = vmatprep.subr.bf16.mxu0 0
        %1936 = vmatpush1.bf16.msra.mxu0 %v1878
        %1937 = vmatprep.subr.bf16.mxu0 0
        %1938 = vmatpush1.bf16.msra.mxu0 0
        %1939 = vmatprep.subr.bf16.mxu0 0
        %1940 = vmatpush1.bf16.msra.mxu0 0
        %1941 = vmatprep.subr.bf16.mxu0 0
        %1942 = vmatpush1.bf16.msra.mxu0 0
        %1943 = vmatprep.subr.bf16.mxu0 0
        %1944 = vmatpush1.bf16.msra.mxu0 0
        %1945 = vmatprep.subr.bf16.mxu0 0
        %1946 = vmatpush1.bf16.msra.mxu0 0
        %1947 = vmatprep.subr.bf16.mxu0 0
        %1948 = vmatpush1.bf16.msra.mxu0 0
        %1949 = vmatprep.subr.bf16.mxu0 0
        %1950 = vmatpush1.bf16.msra.mxu0 0
        %1951 = vmatprep.subr.bf16.mxu0 0
        %1952 = vmatpush1.bf16.msra.mxu0 0
        %1953 = vmatprep.subr.bf16.mxu0 0
        %1954 = vmatpush1.bf16.msra.mxu0 0
        %1955 = vmatprep.subr.bf16.mxu0 0
        %1956 = vmatpush1.bf16.msra.mxu0 0
        %1957 = vmatprep.mubr.bf16.mxu0 0
        %1958 = vmatmul.mubr.bf16.gmra.mrb[0].mxu0 %v1920
        %v1959 = vpop.f32.mrb[0].mxu0
        %v1960 = vadd.f32 %v1892, %v1959
        %v1961 = vpop.f32.mrb[0].mxu0
        %v1962 = vpop.f32.mrb[0].mxu0
        %v1963 = vadd.f32 %v1897, %v1962
        %v1964 = vpop.f32.mrb[0].mxu0
        %1965 = vmatprep.mubr.bf16.mxu0 0
        %1966 = vmatmul.mubr.bf16.gmra.mrb[0].mxu0 %v1923
        %v1967 = vpop.f32.mrb[0].mxu0
        %v1968 = vadd.f32 %v1902, %v1967
        %v1969 = vpop.f32.mrb[0].mxu0
        %v1970 = vpop.f32.mrb[0].mxu0
        %v1971 = vadd.f32 %v1907, %v1970
        %v1972 = vpop.f32.mrb[0].mxu0
        %1973 = vdwg.mxu0
        %v1974 = vmax.f32 %v1960, 0.0
        %v1975 = vmax.f32 %v1963, 0.0
        %v1976 = vmax.f32 %v1968, 0.0
        %v1977 = vmax.f32 %v1971, 0.0
        %s1978 = scalar_lea.vmem [#allocation8], 32
        %v1979 = vld [vmem:[%s1978] sm:$0xf]
        %v1980 = vld [vmem:[%s1978 + $0x4] sm:$0xf]
        %v1981 = vld [vmem:[%s1978 + $0x8] sm:$0xf]
        %v1982 = vld [vmem:[%s1978 + $0xc] sm:$0xf]
        %v1983 = vpack.c.bf16 %v1975, %v1974
        %v1984 = vpack.c.bf16 %v1977, %v1976
        %s1985 = scalar_lea.vmem %s6, 64
        %v1986 = vld [vmem:[%s1985] sm:$0xff]
        %v1987 = vld [vmem:[%s1985 + $0x8] sm:$0xff]
        %v1988 = vld [vmem:[%s1985 + $0x10] sm:$0xff]
        %v1989 = vld [vmem:[%s1985 + $0x18] sm:$0xff]
        %1991 = vset.pattern.permute.xlu0 0
        %1992 = vperm.xlu0 %1991, %v1986
        %v1993 = vpop.permute.xlu0 %1992
        %1996 = vset.pattern.permute.xlu0 0
        %1997 = vperm.xlu0 %1996, %v1987
        %v1998 = vpop.permute.xlu0 %1997
        %2001 = vset.pattern.permute.xlu0 0
        %2002 = vperm.xlu0 %2001, %v1988
        %v2003 = vpop.permute.xlu0 %2002
        %2006 = vset.pattern.permute.xlu0 0
        %2007 = vperm.xlu0 %2006, %v1989
        %v2008 = vpop.permute.xlu0 %2007
        %v2014 = vunpack.c.l.b16 %v1979
        %v2015 = vunpack.c.l.b16 %v1980
        %v2016 = vunpack.c.l.b16 %v1981
        %v2017 = vunpack.c.l.b16 %v1982
        %v2018 = vpack.c.b16 %v2015, %v2014
        %v2019 = vpack.c.b16 %v2017, %v2016
        %v2021 = vsel %vm1567, %v2018, 0
        %v2024 = vsel %vm1567, %v2019, 0
        %2026 = vmatprep.subr.bf16.mxu0 0
        %2027 = vmatpush1.bf16.msra.mxu0 %v1983
        %2028 = vmatprep.subr.bf16.mxu0 0
        %2029 = vmatpush1.bf16.msra.mxu0 %v1984
        %2030 = vmatprep.subr.bf16.mxu0 0
        %2031 = vmatpush1.bf16.msra.mxu0 0
        %2032 = vmatprep.subr.bf16.mxu0 0
        %2033 = vmatpush1.bf16.msra.mxu0 0
        %2034 = vmatprep.subr.bf16.mxu0 0
        %2035 = vmatpush1.bf16.msra.mxu0 0
        %2036 = vmatprep.subr.bf16.mxu0 0
        %2037 = vmatpush1.bf16.msra.mxu0 0
        %2038 = vmatprep.subr.bf16.mxu0 0
        %2039 = vmatpush1.bf16.msra.mxu0 0
        %2040 = vmatprep.subr.bf16.mxu0 0
        %2041 = vmatpush1.bf16.msra.mxu0 0
        %2042 = vmatprep.subr.bf16.mxu0 0
        %2043 = vmatpush1.bf16.msra.mxu0 0
        %2044 = vmatprep.subr.bf16.mxu0 0
        %2045 = vmatpush1.bf16.msra.mxu0 0
        %2046 = vmatprep.subr.bf16.mxu0 0
        %2047 = vmatpush1.bf16.msra.mxu0 0
        %2048 = vmatprep.subr.bf16.mxu0 0
        %2049 = vmatpush1.bf16.msra.mxu0 0
        %2050 = vmatprep.subr.bf16.mxu0 0
        %2051 = vmatpush1.bf16.msra.mxu0 0
        %2052 = vmatprep.subr.bf16.mxu0 0
        %2053 = vmatpush1.bf16.msra.mxu0 0
        %2054 = vmatprep.subr.bf16.mxu0 0
        %2055 = vmatpush1.bf16.msra.mxu0 0
        %2056 = vmatprep.subr.bf16.mxu0 0
        %2057 = vmatpush1.bf16.msra.mxu0 0
        %2058 = vmatprep.mubr.bf16.mxu0 0
        %2059 = vmatmul.mubr.bf16.gmra.mrb[0].mxu0 %v2021
        %v2060 = vpop.f32.mrb[0].mxu0
        %v2061 = vadd.f32 %v1993, %v2060
        %v2062 = vpop.f32.mrb[0].mxu0
        %v2063 = vpop.f32.mrb[0].mxu0
        %v2064 = vadd.f32 %v1998, %v2063
        %v2065 = vpop.f32.mrb[0].mxu0
        %2066 = vmatprep.mubr.bf16.mxu0 0
        %2067 = vmatmul.mubr.bf16.gmra.mrb[0].mxu0 %v2024
        %v2068 = vpop.f32.mrb[0].mxu0
        %v2069 = vadd.f32 %v2003, %v2068
        %v2070 = vpop.f32.mrb[0].mxu0
        %v2071 = vpop.f32.mrb[0].mxu0
        %v2072 = vadd.f32 %v2008, %v2071
        %v2073 = vpop.f32.mrb[0].mxu0
        %2074 = vdwg.mxu0
        %v2075 = vadd.f32 %v2061, %v1849
        %v2076 = vadd.f32 %v2064, %v1850
        %v2077 = vadd.f32 %v2069, %v1851
        %v2078 = vadd.f32 %v2072, %v1852
        %v2079 = vld [vmem:[#allocation10] sm:$0xf]
        %v2080 = vpack.c.bf16 %v2076, %v2075
        %v2081 = vpack.c.bf16 %v2078, %v2077
        %v2082 = vld [vmem:[%s8] sm:$0xff]
        %2084 = vset.pattern.permute.xlu0 0
        %2085 = vperm.xlu0 %2084, %v2082
        %v2086 = vpop.permute.xlu0 %2085
        %v2089 = vsel %vm1567, %v2079, 0
        %2091 = vmatprep.subr.bf16.mxu0 0
        %2092 = vmatpush1.bf16.msra.mxu0 %v2080
        %2093 = vmatprep.subr.bf16.mxu0 0
        %2094 = vmatpush1.bf16.msra.mxu0 %v2081
        %2095 = vmatprep.subr.bf16.mxu0 0
        %2096 = vmatpush1.bf16.msra.mxu0 0
        %2097 = vmatprep.subr.bf16.mxu0 0
        %2098 = vmatpush1.bf16.msra.mxu0 0
        %2099 = vmatprep.subr.bf16.mxu0 0
        %2100 = vmatpush1.bf16.msra.mxu0 0
        %2101 = vmatprep.subr.bf16.mxu0 0
        %2102 = vmatpush1.bf16.msra.mxu0 0
        %2103 = vmatprep.subr.bf16.mxu0 0
        %2104 = vmatpush1.bf16.msra.mxu0 0
        %2105 = vmatprep.subr.bf16.mxu0 0
        %2106 = vmatpush1.bf16.msra.mxu0 0
        %2107 = vmatprep.subr.bf16.mxu0 0
        %2108 = vmatpush1.bf16.msra.mxu0 0
        %2109 = vmatprep.subr.bf16.mxu0 0
        %2110 = vmatpush1.bf16.msra.mxu0 0
        %2111 = vmatprep.subr.bf16.mxu0 0
        %2112 = vmatpush1.bf16.msra.mxu0 0
        %2113 = vmatprep.subr.bf16.mxu0 0
        %2114 = vmatpush1.bf16.msra.mxu0 0
        %2115 = vmatprep.subr.bf16.mxu0 0
        %2116 = vmatpush1.bf16.msra.mxu0 0
        %2117 = vmatprep.subr.bf16.mxu0 0
        %2118 = vmatpush1.bf16.msra.mxu0 0
        %2119 = vmatprep.subr.bf16.mxu0 0
        %2120 = vmatpush1.bf16.msra.mxu0 0
        %2121 = vmatprep.subr.bf16.mxu0 0
        %2122 = vmatpush1.bf16.msra.mxu0 0
        %2123 = vmatprep.mubr.bf16.mxu0 0
        %2124 = vmatmul.mubr.bf16.gmra.mrb[0].mxu0 %v2089
        %v2125 = vpop.f32.mrb[0].mxu0
        %v2126 = vadd.f32 %v2086, %v2125
        %v2127 = vpop.f32.mrb[0].mxu0
        %v2128 = vpop.f32.mrb[0].mxu0
        %v2129 = vpop.f32.mrb[0].mxu0
        %2130 = vdwg.mxu0
        %2131 = vst [vmem:[%s406] sm:$0xff] %v2126
        %s2132 = sand.u32 %s230, 1
        %s2133 = scalar_lea.sflag [#allocation4], %s2132
        %s2134 = sand.u32 %s230, 1
        %s2135 = smul.addr %s2134, 8
        %s2136 = scalar_lea.vmem [#allocation11], %s2135
        // Predicated region
        $region77: #{tpu_custom_call.1} parent=55 // pred_check
          %p2137 = pneg %p240
        $region78: #{tpu_custom_call.1} parent=55 // pred_check_branch
          %2139 = sbr.rel (%p2137) target = $region80
        $region79: #{tpu_custom_call.1} parent=55 // pred_region
          %s2141 = ssub.s32 128, 128
          %2142 = vsyncadd %s2133, %s2141
          %s2143 = smul.addr %s28, 128
          %s2144 = scalar_lea.hbm %s9, %s2143
          %s2146 = sshll.u32 %s2136, 4
          %s2147 = int_to_ptr.vmem [resolvable:$true] %s2146
          %2149 = dma.vmem_to_hbm [thread:$0]  %s2147, 128, %s2144, %s2133
        $region80: #{tpu_custom_call.1} parent=55 // pred_fallthru
          _
      $region56: #{tpu_custom_call.1} parent=5 // pred_fallthru
        _
      %p2150 = scmp.le.s32.totalorder 2, %s23
      // Predicated region
      $region81: #{tpu_custom_call.1} parent=5 // pred_check
        %p2151 = pneg %p2150
      $region82: #{tpu_custom_call.1} parent=5 // pred_check_branch
        %2153 = sbr.rel (%p2151) target = $region84
      $region83: #{tpu_custom_call.1} parent=5 // pred_region
        %s2154 = ssub.s32 %s23, 2
        // Predicated region
        $region85: #{tpu_custom_call.1} parent=83 // pred_check
          %p2155 = pneg %p246
        $region86: #{tpu_custom_call.1} parent=83 // pred_check_branch
          %2157 = sbr.rel (%p2155) target = $region88
        $region87: #{tpu_custom_call.1} parent=83 // pred_region
          %s2158 = sand.u32 %s231, 1
          %s2159 = scalar_lea.sflag [#allocation4], %s2158
          %s2160 = sand.u32 %s231, 1
          %s2161 = smul.addr %s2160, 8
          %s2162 = scalar_lea.vmem [#allocation11], %s2161
          %2163 = dma.done %s2159, 128
        $region88: #{tpu_custom_call.1} parent=83 // pred_fallthru
          _
      $region84: #{tpu_custom_call.1} parent=5 // pred_fallthru
        _
    $region6: #{tpu_custom_call.1} parent=1 // loop_footer
      %s27 = sadd.s32 1, %s23
    $region7: #{tpu_custom_call.1} parent=1 // loop_footer_branch
      %22 = sbr.rel target = $region3
    $region8: #{tpu_custom_call.1} parent=1 // loop_exit
      _
    %2164 = vsyncpa [#allocation3], 1
    %s2165 = scalar_lea.sflag [#allocation3], 1
    %2166 = vsyncpa %s2165, 1
    %2167 = vsyncpa [#allocation6], 1
    %2168 = vsyncpa [#allocation9], 1
    %2169 = vsyncpa [#allocation4], 1
    %s2170 = scalar_lea.sflag [#allocation4], 1
    %2171 = vsyncpa %s2170, 1

</llo_original>
